<compile_context>
chip_gen: v6e
topology: v6e:2x2x1
jax: 0.10.0
libtpu: 0.0.40
codegen_flags: <defaults>
</compile_context>

<pallas_src>
import jax
import jax.numpy as jnp
from jax.experimental import pallas as pl
from jax.experimental.pallas import tpu as pltpu

H1, H2, H3 = 256, 512, 1024
NEG_SLOPE = 0.01          # F.leaky_relu default
LANES = 128
SUBLANES_BF16 = 16        # bf16 packs 16 rows per vreg; keep batch tiles aligned


def _cdiv(a, b):
    return (a + b - 1) // b


def _round_up(n, m):
    return _cdiv(n, m) * m


def _leaky_relu(x):
    # maximum() = 2 VALU ops/elem vs 3 for compare+select; exact for slope in (0,1).
    return jnp.maximum(x, NEG_SLOPE * x)


def generator_kernel(x_ref,
                     w1_ref, b1_ref,
                     w2_ref, b2_ref,
                     w3_ref, b3_ref,
                     w4_ref, b4_ref,
                     o_ref):
    # x is already bf16; all dots run bf16 on the MXU with f32 accumulation,
    # biases are added in f32.
    h = jnp.dot(x_ref[...], w1_ref[...],
                preferred_element_type=jnp.float32) + b1_ref[...]
    h = _leaky_relu(h)

    h = jnp.dot(h.astype(jnp.bfloat16), w2_ref[...],
                preferred_element_type=jnp.float32) + b2_ref[...]
    h = _leaky_relu(h)

    h = jnp.dot(h.astype(jnp.bfloat16), w3_ref[...],
                preferred_element_type=jnp.float32) + b3_ref[...]
    h = _leaky_relu(h)

    z = jnp.dot(h.astype(jnp.bfloat16), w4_ref[...],
                preferred_element_type=jnp.float32) + b4_ref[...]

    # sigmoid(z) = 0.5*tanh(0.5*z) + 0.5 : single EUP push, numerically stable.
    o_ref[...] = (0.5 * jnp.tanh(0.5 * z) + 0.5).astype(o_ref.dtype)


def prepare_params(params):
    """One-time conversion of f32 params to the kernel layout.

    Hoists the bf16 weight casts out of the per-call forward path and pads the
    last layer to a multiple of 128 output lanes (lane-dense stores).
    Weights: bf16 [in, out].  Biases: f32 [1, out].
    """
    out_dim = int(params["w4"].shape[1])
    out_dim_p = _round_up(out_dim, LANES)
    prepared = {"output_dim": out_dim, "padded_output_dim": out_dim_p}
    for i in range(1, 5):
        w = params[f"w{i}"]
        b = params[f"b{i}"].reshape(1, -1)
        if i == 4 and out_dim_p != out_dim:
            w = jnp.pad(w, ((0, 0), (0, out_dim_p - out_dim)))
            b = jnp.pad(b, ((0, 0), (0, out_dim_p - out_dim)))
        prepared[f"w{i}"] = w.astype(jnp.bfloat16)
        prepared[f"b{i}"] = b.astype(jnp.float32)
    return prepared


def _choose_batch_tile(B, batch_tile):
    if batch_tile is not None:
        return _round_up(max(batch_tile, SUBLANES_BF16), SUBLANES_BF16)
    cap = 512  # amortizes the ~0.35us per-grid-step overhead on v6e/v7x
    if B <= cap:
        if B >= 2 * SUBLANES_BF16:
            # Split into two tiles so both v7x TensorCores get work.
            return _round_up(_cdiv(B, 2), SUBLANES_BF16)
        return _round_up(max(B, SUBLANES_BF16), SUBLANES_BF16)
    # Large batch: aim for an even number of grid steps (dual-TC sharding).
    steps = _round_up(_cdiv(B, cap), 2)
    return _round_up(_cdiv(B, steps), SUBLANES_BF16)


def generator_forward(x, prepared, *, batch_tile=None):
    """x: [B, input_dim].  `prepared` comes from prepare_params()."""
    B, input_dim = x.shape
    out_dim = prepared["output_dim"]
    out_dim_p = prepared["padded_output_dim"]

    tb = _choose_batch_tile(B, batch_tile)
    Bp = _round_up(B, tb)

    x = x.astype(jnp.bfloat16)          # half the x-tile DMA; MXU takes bf16
    if Bp != B:
        x = jnp.pad(x, ((0, Bp - B), (0, 0)))

    full = lambda shape: pl.BlockSpec(shape, lambda i: (0, 0))
    # TODO(synk): single-buffer the constant weight/bias blocks
    #   (pipeline_mode=pl.Buffered(1)) and, for the grid=(1,) latency regime,
    #   prefetch weights across pallas_calls (P10) / fp8 w2-w3 on v7x.

    out = pl.pallas_call(
        generator_kernel,
        out_shape=jax.ShapeDtypeStruct((Bp, out_dim_p), jnp.float32),
        grid_spec=pltpu.PrefetchScalarGridSpec(
            num_scalar_prefetch=0,
            grid=(Bp // tb,),
            in_specs=[
                pl.BlockSpec((tb, input_dim), lambda i: (i, 0)),   # x tile
                full((input_dim, H1)), full((1, H1)),
                full((H1, H2)),        full((1, H2)),
                full((H2, H3)),        full((1, H3)),
                full((H3, out_dim_p)), full((1, out_dim_p)),
            ],
            out_specs=pl.BlockSpec((tb, out_dim_p), lambda i: (i, 0)),
        ),
        compiler_params=pltpu.CompilerParams(
            dimension_semantics=("parallel",),      # shard batch over TCs (v7x)
            vmem_limit_bytes=32 * 1024 * 1024,      # headroom for tb up to ~512
        ),
    )(x,
      prepared["w1"], prepared["b1"],
      prepared["w2"], prepared["b2"],
      prepared["w3"], prepared["b3"],
      prepared["w4"], prepared["b4"])

    return out[:B, :out_dim]


def init_params(key, input_dim, output_dim):
    """Deterministic synthetic init (uniform, 1/sqrt(fan_in) scaling)."""
    dims = [(input_dim, H1), (H1, H2), (H2, H3), (H3, output_dim)]
    params = {}
    for idx, (fan_in, fan_out) in enumerate(dims, start=1):
        key, kw, kb = jax.random.split(key, 3)
        scale = (1.0 / fan_in) ** 0.5
        params[f"w{idx}"] = jax.random.uniform(
            kw, (fan_in, fan_out), jnp.float32, -scale, scale)
        params[f"b{idx}"] = jax.random.uniform(
            kb, (1, fan_out), jnp.float32, -scale, scale)
    return params


def reference_forward(x, params):
    """Pure-JAX reference at matched precision (bf16 weights/inputs, f32 accum)."""
    h = x.astype(jnp.bfloat16)
    for idx in range(1, 4):
        w = params[f"w{idx}"].astype(jnp.bfloat16)
        h = jnp.dot(h, w, preferred_element_type=jnp.float32) + params[f"b{idx}"]
        h = jnp.where(h > 0, h, NEG_SLOPE * h)
        h = h.astype(jnp.bfloat16)
    w4 = params["w4"].astype(jnp.bfloat16)
    z = jnp.dot(h, w4, preferred_element_type=jnp.float32) + params["b4"]
    return jax.nn.sigmoid(z)


if __name__ == "__main__":
    key = jax.random.PRNGKey(0)

    # ---- Config A: input_dim=64, output_dim=128 (lane-aligned output) ----
    input_dim, output_dim = 64, 128
    key, kx = jax.random.split(key)
    params = init_params(key, input_dim, output_dim)
    prepared = prepare_params(params)   # bf16 cast hoisted out of forward

    # Case 1: tiny latency-style batch (single grid step).
    x_small = jax.random.normal(kx, (8, input_dim), jnp.float32)
    out_small = jax.block_until_ready(generator_forward(x_small, prepared))
    ref_small = reference_forward(x_small, params)
    assert out_small.shape == (8, output_dim)
    assert jnp.allclose(out_small, ref_small, atol=1e-2), "small-batch mismatch"

    # Case 2: non-divisible batch exercising the tiled 'parallel' grid + padding.
    key, kx2 = jax.random.split(key)
    x_big = jax.random.normal(kx2, (200, input_dim), jnp.float32)
    out_big = jax.block_until_ready(
        generator_forward(x_big, prepared, batch_tile=64))   # grid=(4,)
    ref_big = reference_forward(x_big, params)
    assert out_big.shape == (200, output_dim)
    assert jnp.allclose(out_big, ref_big, atol=1e-2), "tiled-batch mismatch"

    # ---- Config B: output_dim not a multiple of 128 (lane-padding path) ----
    input_dim2, output_dim2 = 32, 100
    key, kp2, kx3 = jax.random.split(key, 3)
    params2 = init_params(kp2, input_dim2, output_dim2)
    prepared2 = prepare_params(params2)       # w4/b4 padded 100 -> 128 lanes
    x_mid = jax.random.normal(kx3, (48, input_dim2), jnp.float32)
    out_mid = jax.block_until_ready(generator_forward(x_mid, prepared2))  # grid=(2,)
    ref_mid = reference_forward(x_mid, params2)
    assert out_mid.shape == (48, output_dim2)
    assert jnp.allclose(out_mid, ref_mid, atol=1e-2), "padded-output mismatch"

    print("KERNEL_OK")
</pallas_src>

<mosaic_0001>
module attributes {stable_mosaic.version = 11 : i64} {
  func.func @generator_kernel(%arg0: i32, %arg1: memref<16x64xbf16, #tpu.memory_space<vmem>>, %arg2: memref<64x256xbf16, #tpu.memory_space<vmem>>, %arg3: memref<1x256xf32, #tpu.memory_space<vmem>>, %arg4: memref<256x512xbf16, #tpu.memory_space<vmem>>, %arg5: memref<1x512xf32, #tpu.memory_space<vmem>>, %arg6: memref<512x1024xbf16, #tpu.memory_space<vmem>>, %arg7: memref<1x1024xf32, #tpu.memory_space<vmem>>, %arg8: memref<1024x128xbf16, #tpu.memory_space<vmem>>, %arg9: memref<1x128xf32, #tpu.memory_space<vmem>>, %arg10: memref<16x128xf32, #tpu.memory_space<vmem>>) attributes {dimension_semantics = [#tpu.dimension_semantics<parallel>], iteration_bounds = array<i64: 1>, scalar_prefetch = 0 : i64, scratch_operands = 0 : i64, tpu.core_type = #tpu.core_type<tc>, window_params = [{transform_indices = @transform_0, window_bounds = array<i64: 16, 64>}, {pipeline_mode = #tpu.pipeline_mode<synchronous>, transform_indices = @transform_1, window_bounds = array<i64: 64, 256>}, {pipeline_mode = #tpu.pipeline_mode<synchronous>, transform_indices = @transform_2, window_bounds = array<i64: 1, 256>}, {pipeline_mode = #tpu.pipeline_mode<synchronous>, transform_indices = @transform_3, window_bounds = array<i64: 256, 512>}, {pipeline_mode = #tpu.pipeline_mode<synchronous>, transform_indices = @transform_4, window_bounds = array<i64: 1, 512>}, {pipeline_mode = #tpu.pipeline_mode<synchronous>, transform_indices = @transform_5, window_bounds = array<i64: 512, 1024>}, {pipeline_mode = #tpu.pipeline_mode<synchronous>, transform_indices = @transform_6, window_bounds = array<i64: 1, 1024>}, {pipeline_mode = #tpu.pipeline_mode<synchronous>, transform_indices = @transform_7, window_bounds = array<i64: 1024, 128>}, {pipeline_mode = #tpu.pipeline_mode<synchronous>, transform_indices = @transform_8, window_bounds = array<i64: 1, 128>}, {transform_indices = @transform_9, window_bounds = array<i64: 16, 128>}]} {
    %c0 = arith.constant 0 : index
    %c0_0 = arith.constant 0 : index
    %0 = vector.load %arg1[%c0, %c0_0] : memref<16x64xbf16, #tpu.memory_space<vmem>>, vector<16x64xbf16>
    %c0_1 = arith.constant 0 : index
    %c0_2 = arith.constant 0 : index
    %1 = vector.load %arg2[%c0_1, %c0_2] : memref<64x256xbf16, #tpu.memory_space<vmem>>, vector<64x256xbf16>
    %cst = arith.constant dense<0.000000e+00> : vector<16x256xf32>
    %2 = tpu.matmul %0, %1, %cst {dimension_numbers = #tpu.dot_dimension_numbers<[1], [0], [0], [1], [0, 0, 1, 1], [], []>} : vector<16x64xbf16>, vector<64x256xbf16>, vector<16x256xf32> -> vector<16x256xf32>
    %c0_3 = arith.constant 0 : index
    %c0_4 = arith.constant 0 : index
    %3 = vector.load %arg3[%c0_3, %c0_4] : memref<1x256xf32, #tpu.memory_space<vmem>>, vector<1x256xf32>
    %4 = vector.broadcast %3 : vector<1x256xf32> to vector<16x256xf32>
    %5 = arith.addf %2, %4 : vector<16x256xf32>
    %cst_5 = arith.constant 0.00999999977 : f32
    %6 = vector.broadcast %cst_5 : f32 to vector<16x256xf32>
    %7 = arith.mulf %6, %5 : vector<16x256xf32>
    %8 = arith.maximumf %5, %7 : vector<16x256xf32>
    %9 = arith.truncf %8 : vector<16x256xf32> to vector<16x256xbf16>
    %c0_6 = arith.constant 0 : index
    %c0_7 = arith.constant 0 : index
    %10 = vector.load %arg4[%c0_6, %c0_7] : memref<256x512xbf16, #tpu.memory_space<vmem>>, vector<256x512xbf16>
    %cst_8 = arith.constant dense<0.000000e+00> : vector<16x512xf32>
    %11 = tpu.matmul %9, %10, %cst_8 {dimension_numbers = #tpu.dot_dimension_numbers<[1], [0], [0], [1], [0, 0, 1, 1], [], []>} : vector<16x256xbf16>, vector<256x512xbf16>, vector<16x512xf32> -> vector<16x512xf32>
    %c0_9 = arith.constant 0 : index
    %c0_10 = arith.constant 0 : index
    %12 = vector.load %arg5[%c0_9, %c0_10] : memref<1x512xf32, #tpu.memory_space<vmem>>, vector<1x512xf32>
    %13 = vector.broadcast %12 : vector<1x512xf32> to vector<16x512xf32>
    %14 = arith.addf %11, %13 : vector<16x512xf32>
    %cst_11 = arith.constant 0.00999999977 : f32
    %15 = vector.broadcast %cst_11 : f32 to vector<16x512xf32>
    %16 = arith.mulf %15, %14 : vector<16x512xf32>
    %17 = arith.maximumf %14, %16 : vector<16x512xf32>
    %18 = arith.truncf %17 : vector<16x512xf32> to vector<16x512xbf16>
    %c0_12 = arith.constant 0 : index
    %c0_13 = arith.constant 0 : index
    %19 = vector.load %arg6[%c0_12, %c0_13] : memref<512x1024xbf16, #tpu.memory_space<vmem>>, vector<512x1024xbf16>
    %cst_14 = arith.constant dense<0.000000e+00> : vector<16x1024xf32>
    %20 = tpu.matmul %18, %19, %cst_14 {dimension_numbers = #tpu.dot_dimension_numbers<[1], [0], [0], [1], [0, 0, 1, 1], [], []>} : vector<16x512xbf16>, vector<512x1024xbf16>, vector<16x1024xf32> -> vector<16x1024xf32>
    %c0_15 = arith.constant 0 : index
    %c0_16 = arith.constant 0 : index
    %21 = vector.load %arg7[%c0_15, %c0_16] : memref<1x1024xf32, #tpu.memory_space<vmem>>, vector<1x1024xf32>
    %22 = vector.broadcast %21 : vector<1x1024xf32> to vector<16x1024xf32>
    %23 = arith.addf %20, %22 : vector<16x1024xf32>
    %cst_17 = arith.constant 0.00999999977 : f32
    %24 = vector.broadcast %cst_17 : f32 to vector<16x1024xf32>
    %25 = arith.mulf %24, %23 : vector<16x1024xf32>
    %26 = arith.maximumf %23, %25 : vector<16x1024xf32>
    %27 = arith.truncf %26 : vector<16x1024xf32> to vector<16x1024xbf16>
    %c0_18 = arith.constant 0 : index
    %c0_19 = arith.constant 0 : index
    %28 = vector.load %arg8[%c0_18, %c0_19] : memref<1024x128xbf16, #tpu.memory_space<vmem>>, vector<1024x128xbf16>
    %cst_20 = arith.constant dense<0.000000e+00> : vector<16x128xf32>
    %29 = tpu.matmul %27, %28, %cst_20 {dimension_numbers = #tpu.dot_dimension_numbers<[1], [0], [0], [1], [0, 0, 1, 1], [], []>} : vector<16x1024xbf16>, vector<1024x128xbf16>, vector<16x128xf32> -> vector<16x128xf32>
    %c0_21 = arith.constant 0 : index
    %c0_22 = arith.constant 0 : index
    %30 = vector.load %arg9[%c0_21, %c0_22] : memref<1x128xf32, #tpu.memory_space<vmem>>, vector<1x128xf32>
    %31 = vector.broadcast %30 : vector<1x128xf32> to vector<16x128xf32>
    %32 = arith.addf %29, %31 : vector<16x128xf32>
    %cst_23 = arith.constant 5.000000e-01 : f32
    %33 = vector.broadcast %cst_23 : f32 to vector<16x128xf32>
    %34 = arith.mulf %33, %32 : vector<16x128xf32>
    %35 = math.tanh %34 : vector<16x128xf32>
    %cst_24 = arith.constant 5.000000e-01 : f32
    %36 = vector.broadcast %cst_24 : f32 to vector<16x128xf32>
    %37 = arith.mulf %36, %35 : vector<16x128xf32>
    %cst_25 = arith.constant 5.000000e-01 : f32
    %38 = vector.broadcast %cst_25 : f32 to vector<16x128xf32>
    %39 = arith.addf %37, %38 : vector<16x128xf32>
    %c0_26 = arith.constant 0 : index
    %c0_27 = arith.constant 0 : index
    %40 = vector.load %arg10[%c0_26, %c0_27] : memref<16x128xf32, #tpu.memory_space<vmem>>, vector<16x128xf32>
    tpu.vector_store %arg10[%c0_26, %c0_27], %39 {strides = array<i32>} : memref<16x128xf32, #tpu.memory_space<vmem>>, vector<16x128xf32>,
    return
  }
  func.func @transform_0(%arg0: i32) -> (i32, i32) {
    %c0_i32 = arith.constant 0 : i32
    %c0_i32_0 = arith.constant 0 : i32
    return %arg0, %c0_i32 : i32, i32
  }
  func.func @transform_1(%arg0: i32) -> (i32, i32) {
    %c0_i32 = arith.constant 0 : i32
    %c0_i32_0 = arith.constant 0 : i32
    %c0_i32_1 = arith.constant 0 : i32
    return %c0_i32, %c0_i32_0 : i32, i32
  }
  func.func @transform_2(%arg0: i32) -> (i32, i32) {
    %c0_i32 = arith.constant 0 : i32
    %c0_i32_0 = arith.constant 0 : i32
    %c0_i32_1 = arith.constant 0 : i32
    return %c0_i32, %c0_i32_0 : i32, i32
  }
  func.func @transform_3(%arg0: i32) -> (i32, i32) {
    %c0_i32 = arith.constant 0 : i32
    %c0_i32_0 = arith.constant 0 : i32
    %c0_i32_1 = arith.constant 0 : i32
    return %c0_i32, %c0_i32_0 : i32, i32
  }
  func.func @transform_4(%arg0: i32) -> (i32, i32) {
    %c0_i32 = arith.constant 0 : i32
    %c0_i32_0 = arith.constant 0 : i32
    %c0_i32_1 = arith.constant 0 : i32
    return %c0_i32, %c0_i32_0 : i32, i32
  }
  func.func @transform_5(%arg0: i32) -> (i32, i32) {
    %c0_i32 = arith.constant 0 : i32
    %c0_i32_0 = arith.constant 0 : i32
    %c0_i32_1 = arith.constant 0 : i32
    return %c0_i32, %c0_i32_0 : i32, i32
  }
  func.func @transform_6(%arg0: i32) -> (i32, i32) {
    %c0_i32 = arith.constant 0 : i32
    %c0_i32_0 = arith.constant 0 : i32
    %c0_i32_1 = arith.constant 0 : i32
    return %c0_i32, %c0_i32_0 : i32, i32
  }
  func.func @transform_7(%arg0: i32) -> (i32, i32) {
    %c0_i32 = arith.constant 0 : i32
    %c0_i32_0 = arith.constant 0 : i32
    %c0_i32_1 = arith.constant 0 : i32
    return %c0_i32, %c0_i32_0 : i32, i32
  }
  func.func @transform_8(%arg0: i32) -> (i32, i32) {
    %c0_i32 = arith.constant 0 : i32
    %c0_i32_0 = arith.constant 0 : i32
    %c0_i32_1 = arith.constant 0 : i32
    return %c0_i32, %c0_i32_0 : i32, i32
  }
  func.func @transform_9(%arg0: i32) -> (i32, i32) {
    %c0_i32 = arith.constant 0 : i32
    %c0_i32_0 = arith.constant 0 : i32
    return %arg0, %c0_i32 : i32, i32
  }
}

</mosaic_0001>

<llo_original>
// kernel: tpu_custom_call.1
$region0: #{tpu_custom_call.1}
  #allocation0 [shape = 'u32[]', space=smem, size = 0x4, offset = 0x4, fixed_abs, tag = 'smem constant byte address 0x4 - core index']
  #allocation1 [shape = 'u32[144,128]{1,0:T(1,128)}', space=vmem, size = 0x12000, scoped, tag = 'internal scratch']
  %s0 = inlined_call_operand.hbm [shape: bf16[16,64], index: 0, kind: input, shape index: {}]
  %s1 = inlined_call_operand.hbm [shape: bf16[64,256], index: 1, kind: input, shape index: {}]
  %s2 = inlined_call_operand.vmem [shape: f32[1,256], index: 2, kind: input, shape index: {}]
  %s3 = inlined_call_operand.hbm [shape: bf16[256,512], index: 3, kind: input, shape index: {}]
  %s4 = inlined_call_operand.hbm [shape: f32[1,512], index: 4, kind: input, shape index: {}]
  %s5 = inlined_call_operand.hbm [shape: bf16[512,1024], index: 5, kind: input, shape index: {}]
  %s6 = inlined_call_operand.vmem [shape: f32[1,1024], index: 6, kind: input, shape index: {}]
  %s7 = inlined_call_operand.hbm [shape: bf16[1024,128], index: 7, kind: input, shape index: {}]
  %s8 = inlined_call_operand.vmem [shape: f32[1,128], index: 8, kind: input, shape index: {}]
  %s9 = inlined_call_operand.hbm [shape: f32[16,128], index: 9, kind: output, shape index: {}]
  %s10 = sld [smem:[#allocation0]]
  $region70: #{tpu_custom_call.1} parent=0
    _
  %s12 = ssub.s32 1, %s10
  %s13 = scalar_select 0, %s12, %s10
  $region1: #{tpu_custom_call.1} parent=0
    #allocation2 [shape = 'u8[4096]{0}', space=vmem, size = 0x1000, scoped, tag = 'input window, operand 0, single buffered']
    #allocation3 [shape = 's32[1]{0}', space=sflag, size = 0x4, scoped, tag = 'scoped memory for tpu_custom_call.1']
    #allocation4 [shape = 's32[1]{0}', space=sflag, size = 0x4, scoped, tag = 'scoped memory for tpu_custom_call.1']
    #allocation5 [shape = 'u8[32768]{0}', space=vmem, size = 0x8000, scoped, tag = 'input window, operand 1, single buffered']
    #allocation6 [shape = 's32[1]{0}', space=sflag, size = 0x4, scoped, tag = 'scoped memory for tpu_custom_call.1']
    #allocation7 [shape = 'u8[262144]{0}', space=vmem, size = 0x40000, scoped, tag = 'input window, operand 3, single buffered']
    #allocation8 [shape = 'u8[2048]{0}', space=vmem, size = 0x800, scoped, tag = 'input window, operand 4, single buffered']
    #allocation9 [shape = 's32[1]{0}', space=sflag, size = 0x4, scoped, tag = 'scoped memory for tpu_custom_call.1']
    #allocation10 [shape = 'u8[1048576]{0}', space=vmem, size = 0x100000, scoped, tag = 'input window, operand 5, single buffered']
    #allocation11 [shape = 'u8[262144]{0}', space=vmem, size = 0x40000, scoped, tag = 'input window, operand 7, single buffered']
    #allocation12 [shape = 's32[1]{0}', space=sflag, size = 0x4, scoped, tag = 'scoped memory for tpu_custom_call.1']
    #allocation13 [shape = 'u8[8192]{0}', space=vmem, size = 0x2000, scoped, tag = 'output window, operand 0, single buffered']
    %14 = vsyncpa [#allocation3], 0
    %15 = vsyncpa [#allocation6], 0
    %16 = vsyncpa [#allocation9], 0
    %17 = vsyncpa [#allocation12], 0
    %18 = vsyncpa [#allocation4], 0
    // Predicated region
    $region2: #{tpu_custom_call.1} parent=1 // pred_check
      _
    $region3: #{tpu_custom_call.1} parent=1 // pred_check_branch
      %20 = sbr.rel (0) target = $region5
    $region4: #{tpu_custom_call.1} parent=1 // pred_region
      %s22 = ssub.s32 128, 128
      %23 = vsyncadd [#allocation3], %s22
      %s24 = sshll.u32 [#allocation2], 4
      %s25 = int_to_ptr.vmem [resolvable:$true] %s24
      %30 = dma.hbm_to_vmem [thread:$0]  %s0, 128, %s25, [#allocation3], 64, 64, 4
    $region5: #{tpu_custom_call.1} parent=1 // pred_fallthru
      _
    // Predicated region
    $region6: #{tpu_custom_call.1} parent=1 // pred_check
      _
    $region7: #{tpu_custom_call.1} parent=1 // pred_check_branch
      %32 = sbr.rel (0) target = $region9
    $region8: #{tpu_custom_call.1} parent=1 // pred_region
      %s34 = ssub.s32 1024, 1024
      %35 = vsyncadd [#allocation6], %s34
      %s36 = sshll.u32 [#allocation5], 4
      %s37 = int_to_ptr.vmem [resolvable:$true] %s36
      %42 = dma.hbm_to_vmem [thread:$0]  %s1, 1024, %s37, [#allocation6], 128, 128, 8
    $region9: #{tpu_custom_call.1} parent=1 // pred_fallthru
      _
    // Predicated region
    $region10: #{tpu_custom_call.1} parent=1 // pred_check
      _
    $region11: #{tpu_custom_call.1} parent=1 // pred_check_branch
      %44 = sbr.rel (0) target = $region13
    $region12: #{tpu_custom_call.1} parent=1 // pred_region
      _
    $region13: #{tpu_custom_call.1} parent=1 // pred_fallthru
      _
    // Predicated region
    $region14: #{tpu_custom_call.1} parent=1 // pred_check
      _
    $region15: #{tpu_custom_call.1} parent=1 // pred_check_branch
      %46 = sbr.rel (0) target = $region17
    $region16: #{tpu_custom_call.1} parent=1 // pred_region
      %s48 = ssub.s32 8192, 8192
      %49 = vsyncadd [#allocation6], %s48
      %s50 = sshll.u32 [#allocation7], 4
      %s51 = int_to_ptr.vmem [resolvable:$true] %s50
      %56 = dma.hbm_to_vmem [thread:$0]  %s3, 8192, %s51, [#allocation6], 256, 256, 16
    $region17: #{tpu_custom_call.1} parent=1 // pred_fallthru
      _
    // Predicated region
    $region18: #{tpu_custom_call.1} parent=1 // pred_check
      _
    $region19: #{tpu_custom_call.1} parent=1 // pred_check_branch
      %58 = sbr.rel (0) target = $region21
    $region20: #{tpu_custom_call.1} parent=1 // pred_region
      %s60 = ssub.s32 64, 64
      %61 = vsyncadd [#allocation9], %s60
      %s63 = sshll.u32 [#allocation8], 4
      %s64 = int_to_ptr.vmem [resolvable:$true] %s63
      %66 = dma.hbm_to_vmem [thread:$0]  %s4, 64, %s64, [#allocation9]
    $region21: #{tpu_custom_call.1} parent=1 // pred_fallthru
      _
    // Predicated region
    $region22: #{tpu_custom_call.1} parent=1 // pred_check
      _
    $region23: #{tpu_custom_call.1} parent=1 // pred_check_branch
      %68 = sbr.rel (0) target = $region25
    $region24: #{tpu_custom_call.1} parent=1 // pred_region
      %s70 = ssub.s32 32768, 32768
      %71 = vsyncadd [#allocation9], %s70
      %s72 = sshll.u32 [#allocation10], 4
      %s73 = int_to_ptr.vmem [resolvable:$true] %s72
      %78 = dma.hbm_to_vmem [thread:$0]  %s5, 32768, %s73, [#allocation9], 512, 512, 32
    $region25: #{tpu_custom_call.1} parent=1 // pred_fallthru
      _
    // Predicated region
    $region26: #{tpu_custom_call.1} parent=1 // pred_check
      _
    $region27: #{tpu_custom_call.1} parent=1 // pred_check_branch
      %80 = sbr.rel (0) target = $region29
    $region28: #{tpu_custom_call.1} parent=1 // pred_region
      _
    $region29: #{tpu_custom_call.1} parent=1 // pred_fallthru
      _
    // Predicated region
    $region30: #{tpu_custom_call.1} parent=1 // pred_check
      _
    $region31: #{tpu_custom_call.1} parent=1 // pred_check_branch
      %82 = sbr.rel (0) target = $region33
    $region32: #{tpu_custom_call.1} parent=1 // pred_region
      %s84 = ssub.s32 8192, 8192
      %85 = vsyncadd [#allocation12], %s84
      %s86 = sshll.u32 [#allocation11], 4
      %s87 = int_to_ptr.vmem [resolvable:$true] %s86
      %92 = dma.hbm_to_vmem [thread:$0]  %s7, 8192, %s87, [#allocation12], 64, 64, 4
    $region33: #{tpu_custom_call.1} parent=1 // pred_fallthru
      _
    // Predicated region
    $region34: #{tpu_custom_call.1} parent=1 // pred_check
      _
    $region35: #{tpu_custom_call.1} parent=1 // pred_check_branch
      %94 = sbr.rel (0) target = $region37
    $region36: #{tpu_custom_call.1} parent=1 // pred_region
      _
    $region37: #{tpu_custom_call.1} parent=1 // pred_fallthru
      _
    // Predicated region
    $region38: #{tpu_custom_call.1} parent=1 // pred_check
      _
    $region39: #{tpu_custom_call.1} parent=1 // pred_check_branch
      %96 = sbr.rel (0) target = $region41
    $region40: #{tpu_custom_call.1} parent=1 // pred_region
      %97 = dma.done [#allocation3], 128
    $region41: #{tpu_custom_call.1} parent=1 // pred_fallthru
      _
    // Predicated region
    $region42: #{tpu_custom_call.1} parent=1 // pred_check
      _
    $region43: #{tpu_custom_call.1} parent=1 // pred_check_branch
      %99 = sbr.rel (0) target = $region45
    $region44: #{tpu_custom_call.1} parent=1 // pred_region
      %100 = dma.done [#allocation6], 1024
    $region45: #{tpu_custom_call.1} parent=1 // pred_fallthru
      _
    // Predicated region
    $region46: #{tpu_custom_call.1} parent=1 // pred_check
      _
    $region47: #{tpu_custom_call.1} parent=1 // pred_check_branch
      %102 = sbr.rel (0) target = $region49
    $region48: #{tpu_custom_call.1} parent=1 // pred_region
      %103 = dma.done [#allocation6], 8192
    $region49: #{tpu_custom_call.1} parent=1 // pred_fallthru
      _
    // Predicated region
    $region50: #{tpu_custom_call.1} parent=1 // pred_check
      _
    $region51: #{tpu_custom_call.1} parent=1 // pred_check_branch
      %105 = sbr.rel (0) target = $region53
    $region52: #{tpu_custom_call.1} parent=1 // pred_region
      %106 = dma.done [#allocation9], 64
    $region53: #{tpu_custom_call.1} parent=1 // pred_fallthru
      _
    // Predicated region
    $region54: #{tpu_custom_call.1} parent=1 // pred_check
      _
    $region55: #{tpu_custom_call.1} parent=1 // pred_check_branch
      %108 = sbr.rel (0) target = $region57
    $region56: #{tpu_custom_call.1} parent=1 // pred_region
      %109 = dma.done [#allocation9], 32768
    $region57: #{tpu_custom_call.1} parent=1 // pred_fallthru
      _
    // Predicated region
    $region58: #{tpu_custom_call.1} parent=1 // pred_check
      _
    $region59: #{tpu_custom_call.1} parent=1 // pred_check_branch
      %111 = sbr.rel (0) target = $region61
    $region60: #{tpu_custom_call.1} parent=1 // pred_region
      %112 = dma.done [#allocation12], 8192
    $region61: #{tpu_custom_call.1} parent=1 // pred_fallthru
      _
    %v114 = vld [vmem:[#allocation2] sm:$0xf]
    %v115 = vld [vmem:[#allocation2 + $0x4] sm:$0xf]
    %v116 = vld [vmem:[#allocation5] sm:$0xff]
    %v117 = vld [vmem:[#allocation5 + $0x8] sm:$0xff]
    %v118 = vld [vmem:[#allocation5 + $0x10] sm:$0xff]
    %v119 = vld [vmem:[#allocation5 + $0x18] sm:$0xff]
    %v120 = vld [vmem:[#allocation5 + $0x20] sm:$0xff]
    %v121 = vld [vmem:[#allocation5 + $0x28] sm:$0xff]
    %v122 = vld [vmem:[#allocation5 + $0x30] sm:$0xff]
    %v123 = vld [vmem:[#allocation5 + $0x38] sm:$0xff]
    %v124 = vld [vmem:[%s2] sm:$0x3]
    %v126 = vlaneseq
    %v127 = vshrl.u32 %v126, 7
    %v128 = vsub.s32 0, %v127
    %v129 = vrot.slane %v124, %v128
    %v130 = vlaneseq
    %v131 = vshrl.u32 %v130, 7
    %v132 = vsub.s32 1, %v131
    %v133 = vrot.slane %v124, %v132
    %v138 = vunpack.c.l.b16 %v114
    %v139 = vunpack.c.l.b16 %v115
    %v140 = vpack.c.b16 %v139, %v138
    %v149 = vunpack.c.l.b16 %v116
    %v150 = vunpack.c.h.b16 %v116
    %v151 = vunpack.c.l.b16 %v117
    %v152 = vunpack.c.h.b16 %v117
    %v153 = vunpack.c.l.b16 %v118
    %v154 = vunpack.c.h.b16 %v118
    %v155 = vunpack.c.l.b16 %v119
    %v156 = vunpack.c.h.b16 %v119
    %v157 = vunpack.c.l.b16 %v120
    %v158 = vunpack.c.h.b16 %v120
    %v159 = vunpack.c.l.b16 %v121
    %v160 = vunpack.c.h.b16 %v121
    %v161 = vunpack.c.l.b16 %v122
    %v162 = vunpack.c.h.b16 %v122
    %v163 = vunpack.c.l.b16 %v123
    %v164 = vunpack.c.h.b16 %v123
    %v165 = vpack.c.b16 %v151, %v149
    %v166 = vpack.c.b16 %v152, %v150
    %v167 = vpack.c.b16 %v155, %v153
    %v168 = vpack.c.b16 %v156, %v154
    %v169 = vpack.c.b16 %v159, %v157
    %v170 = vpack.c.b16 %v160, %v158
    %v171 = vpack.c.b16 %v163, %v161
    %v172 = vpack.c.b16 %v164, %v162
    %vm181 = vcmask 523264
    %v183 = vsel %vm181, %v140, 0
    %185 = vmatprep.subr.bf16.mxu0 0
    %186 = vmatpush1.bf16.msra.mxu0 0
    %187 = vmatprep.subr.bf16.mxu0 0
    %188 = vmatpush1.bf16.msra.mxu0 0
    %189 = vmatprep.subr.bf16.mxu0 0
    %190 = vmatpush1.bf16.msra.mxu0 0
    %191 = vmatprep.subr.bf16.mxu0 0
    %192 = vmatpush1.bf16.msra.mxu0 0
    %193 = vmatprep.subr.bf16.mxu0 %v172
    %194 = vmatpush1.bf16.msra.mxu0 %v171
    %195 = vmatprep.subr.bf16.mxu0 %v170
    %196 = vmatpush1.bf16.msra.mxu0 %v169
    %197 = vmatprep.subr.bf16.mxu0 %v168
    %198 = vmatpush1.bf16.msra.mxu0 %v167
    %199 = vmatprep.subr.bf16.mxu0 %v166
    %200 = vmatpush1.bf16.msra.mxu0 %v165
    %201 = vmatprep.subr.bf16.mxu0 0
    %202 = vmatpush2.bf16.msra.mxu0 0
    %203 = vmatprep.subr.bf16.mxu0 0
    %204 = vmatpush2.bf16.msra.mxu0 0
    %205 = vmatprep.subr.bf16.mxu0 0
    %206 = vmatpush2.bf16.msra.mxu0 0
    %207 = vmatprep.subr.bf16.mxu0 0
    %208 = vmatpush2.bf16.msra.mxu0 0
    %209 = vmatprep.subr.bf16.mxu0 0
    %210 = vmatpush2.bf16.msra.mxu0 0
    %211 = vmatprep.subr.bf16.mxu0 0
    %212 = vmatpush2.bf16.msra.mxu0 0
    %213 = vmatprep.subr.bf16.mxu0 0
    %214 = vmatpush2.bf16.msra.mxu0 0
    %215 = vmatprep.subr.bf16.mxu0 0
    %216 = vmatpush2.bf16.msra.mxu0 0
    %217 = vmatprep.mubr.bf16.mxu0 0
    %218 = vmatmul.mubr.bf16.gmra.mxu0 %v183
    %v219 = vpop.f32.mrf.mxu0
    %v220 = vadd.f32 %v129, %v219
    %v221 = vpop.f32.mrf.mxu0
    %v222 = vadd.f32 %v133, %v221
    %v223 = vpop.f32.mrf.mxu0
    %v224 = vadd.f32 %v129, %v223
    %v225 = vpop.f32.mrf.mxu0
    %v226 = vadd.f32 %v133, %v225
    %227 = vdwg.mxu0
    %v228 = vmul.f32 %v220, 0.01
    %v229 = vmul.f32 %v222, 0.01
    %v230 = vmul.f32 %v224, 0.01
    %v231 = vmul.f32 %v226, 0.01
    %v232 = vmax.f32 %v220, %v228
    %v233 = vmax.f32 %v222, %v229
    %v234 = vmax.f32 %v224, %v230
    %v235 = vmax.f32 %v226, %v231
    %v236 = vpack.c.bf16 %v234, %v232
    %v237 = vpack.c.bf16 %v235, %v233
    %v238 = vld [vmem:[#allocation7] sm:$0xff]
    %v239 = vld [vmem:[#allocation7 + $0x8] sm:$0xff]
    %v240 = vld [vmem:[#allocation7 + $0x10] sm:$0xff]
    %v241 = vld [vmem:[#allocation7 + $0x18] sm:$0xff]
    %v242 = vld [vmem:[#allocation7 + $0x20] sm:$0xff]
    %v243 = vld [vmem:[#allocation7 + $0x28] sm:$0xff]
    %v244 = vld [vmem:[#allocation7 + $0x30] sm:$0xff]
    %v245 = vld [vmem:[#allocation7 + $0x38] sm:$0xff]
    %v246 = vld [vmem:[#allocation7 + $0x40] sm:$0xff]
    %v247 = vld [vmem:[#allocation7 + $0x48] sm:$0xff]
    %v248 = vld [vmem:[#allocation7 + $0x50] sm:$0xff]
    %v249 = vld [vmem:[#allocation7 + $0x58] sm:$0xff]
    %v250 = vld [vmem:[#allocation7 + $0x60] sm:$0xff]
    %v251 = vld [vmem:[#allocation7 + $0x68] sm:$0xff]
    %v252 = vld [vmem:[#allocation7 + $0x70] sm:$0xff]
    %v253 = vld [vmem:[#allocation7 + $0x78] sm:$0xff]
    %v254 = vld [vmem:[#allocation7 + $0x80] sm:$0xff]
    %v255 = vld [vmem:[#allocation7 + $0x88] sm:$0xff]
    %v256 = vld [vmem:[#allocation7 + $0x90] sm:$0xff]
    %v257 = vld [vmem:[#allocation7 + $0x98] sm:$0xff]
    %v258 = vld [vmem:[#allocation7 + $0xa0] sm:$0xff]
    %v259 = vld [vmem:[#allocation7 + $0xa8] sm:$0xff]
    %v260 = vld [vmem:[#allocation7 + $0xb0] sm:$0xff]
    %v261 = vld [vmem:[#allocation7 + $0xb8] sm:$0xff]
    %v262 = vld [vmem:[#allocation7 + $0xc0] sm:$0xff]
    %v263 = vld [vmem:[#allocation7 + $0xc8] sm:$0xff]
    %v264 = vld [vmem:[#allocation7 + $0xd0] sm:$0xff]
    %v265 = vld [vmem:[#allocation7 + $0xd8] sm:$0xff]
    %v266 = vld [vmem:[#allocation7 + $0xe0] sm:$0xff]
    %v267 = vld [vmem:[#allocation7 + $0xe8] sm:$0xff]
    %v268 = vld [vmem:[#allocation7 + $0xf0] sm:$0xff]
    %v269 = vld [vmem:[#allocation7 + $0xf8] sm:$0xff]
    %v270 = vld [vmem:[#allocation7 + $0x100] sm:$0xff]
    %v271 = vld [vmem:[#allocation7 + $0x108] sm:$0xff]
    %v272 = vld [vmem:[#allocation7 + $0x110] sm:$0xff]
    %v273 = vld [vmem:[#allocation7 + $0x118] sm:$0xff]
    %v274 = vld [vmem:[#allocation7 + $0x120] sm:$0xff]
    %v275 = vld [vmem:[#allocation7 + $0x128] sm:$0xff]
    %v276 = vld [vmem:[#allocation7 + $0x130] sm:$0xff]
    %v277 = vld [vmem:[#allocation7 + $0x138] sm:$0xff]
    %v278 = vld [vmem:[#allocation7 + $0x140] sm:$0xff]
    %v279 = vld [vmem:[#allocation7 + $0x148] sm:$0xff]
    %v280 = vld [vmem:[#allocation7 + $0x150] sm:$0xff]
    %v281 = vld [vmem:[#allocation7 + $0x158] sm:$0xff]
    %v282 = vld [vmem:[#allocation7 + $0x160] sm:$0xff]
    %v283 = vld [vmem:[#allocation7 + $0x168] sm:$0xff]
    %v284 = vld [vmem:[#allocation7 + $0x170] sm:$0xff]
    %v285 = vld [vmem:[#allocation7 + $0x178] sm:$0xff]
    %v286 = vld [vmem:[#allocation7 + $0x180] sm:$0xff]
    %v287 = vld [vmem:[#allocation7 + $0x188] sm:$0xff]
    %v288 = vld [vmem:[#allocation7 + $0x190] sm:$0xff]
    %v289 = vld [vmem:[#allocation7 + $0x198] sm:$0xff]
    %v290 = vld [vmem:[#allocation7 + $0x1a0] sm:$0xff]
    %v291 = vld [vmem:[#allocation7 + $0x1a8] sm:$0xff]
    %v292 = vld [vmem:[#allocation7 + $0x1b0] sm:$0xff]
    %v293 = vld [vmem:[#allocation7 + $0x1b8] sm:$0xff]
    %v294 = vld [vmem:[#allocation7 + $0x1c0] sm:$0xff]
    %v295 = vld [vmem:[#allocation7 + $0x1c8] sm:$0xff]
    %v296 = vld [vmem:[#allocation7 + $0x1d0] sm:$0xff]
    %v297 = vld [vmem:[#allocation7 + $0x1d8] sm:$0xff]
    %v298 = vld [vmem:[#allocation7 + $0x1e0] sm:$0xff]
    %v299 = vld [vmem:[#allocation7 + $0x1e8] sm:$0xff]
    %v300 = vld [vmem:[#allocation7 + $0x1f0] sm:$0xff]
    %v301 = vld [vmem:[#allocation7 + $0x1f8] sm:$0xff]
    %v302 = vld [vmem:[#allocation8] sm:$0xf]
    %v304 = vlaneseq
    %v305 = vshrl.u32 %v304, 7
    %v306 = vsub.s32 0, %v305
    %v307 = vrot.slane %v302, %v306
    %v308 = vlaneseq
    %v309 = vshrl.u32 %v308, 7
    %v310 = vsub.s32 1, %v309
    %v311 = vrot.slane %v302, %v310
    %v312 = vlaneseq
    %v313 = vshrl.u32 %v312, 7
    %v314 = vsub.s32 2, %v313
    %v315 = vrot.slane %v302, %v314
    %v316 = vlaneseq
    %v317 = vshrl.u32 %v316, 7
    %v318 = vsub.s32 3, %v317
    %v319 = vrot.slane %v302, %v318
    %v388 = vunpack.c.l.b16 %v238
    %v389 = vunpack.c.h.b16 %v238
    %v390 = vunpack.c.l.b16 %v239
    %v391 = vunpack.c.h.b16 %v239
    %v392 = vunpack.c.l.b16 %v240
    %v393 = vunpack.c.h.b16 %v240
    %v394 = vunpack.c.l.b16 %v241
    %v395 = vunpack.c.h.b16 %v241
    %v396 = vunpack.c.l.b16 %v242
    %v397 = vunpack.c.h.b16 %v242
    %v398 = vunpack.c.l.b16 %v243
    %v399 = vunpack.c.h.b16 %v243
    %v400 = vunpack.c.l.b16 %v244
    %v401 = vunpack.c.h.b16 %v244
    %v402 = vunpack.c.l.b16 %v245
    %v403 = vunpack.c.h.b16 %v245
    %v404 = vunpack.c.l.b16 %v246
    %v405 = vunpack.c.h.b16 %v246
    %v406 = vunpack.c.l.b16 %v247
    %v407 = vunpack.c.h.b16 %v247
    %v408 = vunpack.c.l.b16 %v248
    %v409 = vunpack.c.h.b16 %v248
    %v410 = vunpack.c.l.b16 %v249
    %v411 = vunpack.c.h.b16 %v249
    %v412 = vunpack.c.l.b16 %v250
    %v413 = vunpack.c.h.b16 %v250
    %v414 = vunpack.c.l.b16 %v251
    %v415 = vunpack.c.h.b16 %v251
    %v416 = vunpack.c.l.b16 %v252
    %v417 = vunpack.c.h.b16 %v252
    %v418 = vunpack.c.l.b16 %v253
    %v419 = vunpack.c.h.b16 %v253
    %v420 = vunpack.c.l.b16 %v254
    %v421 = vunpack.c.h.b16 %v254
    %v422 = vunpack.c.l.b16 %v255
    %v423 = vunpack.c.h.b16 %v255
    %v424 = vunpack.c.l.b16 %v256
    %v425 = vunpack.c.h.b16 %v256
    %v426 = vunpack.c.l.b16 %v257
    %v427 = vunpack.c.h.b16 %v257
    %v428 = vunpack.c.l.b16 %v258
    %v429 = vunpack.c.h.b16 %v258
    %v430 = vunpack.c.l.b16 %v259
    %v431 = vunpack.c.h.b16 %v259
    %v432 = vunpack.c.l.b16 %v260
    %v433 = vunpack.c.h.b16 %v260
    %v434 = vunpack.c.l.b16 %v261
    %v435 = vunpack.c.h.b16 %v261
    %v436 = vunpack.c.l.b16 %v262
    %v437 = vunpack.c.h.b16 %v262
    %v438 = vunpack.c.l.b16 %v263
    %v439 = vunpack.c.h.b16 %v263
    %v440 = vunpack.c.l.b16 %v264
    %v441 = vunpack.c.h.b16 %v264
    %v442 = vunpack.c.l.b16 %v265
    %v443 = vunpack.c.h.b16 %v265
    %v444 = vunpack.c.l.b16 %v266
    %v445 = vunpack.c.h.b16 %v266
    %v446 = vunpack.c.l.b16 %v267
    %v447 = vunpack.c.h.b16 %v267
    %v448 = vunpack.c.l.b16 %v268
    %v449 = vunpack.c.h.b16 %v268
    %v450 = vunpack.c.l.b16 %v269
    %v451 = vunpack.c.h.b16 %v269
    %v452 = vunpack.c.l.b16 %v270
    %v453 = vunpack.c.h.b16 %v270
    %v454 = vunpack.c.l.b16 %v271
    %v455 = vunpack.c.h.b16 %v271
    %v456 = vunpack.c.l.b16 %v272
    %v457 = vunpack.c.h.b16 %v272
    %v458 = vunpack.c.l.b16 %v273
    %v459 = vunpack.c.h.b16 %v273
    %v460 = vunpack.c.l.b16 %v274
    %v461 = vunpack.c.h.b16 %v274
    %v462 = vunpack.c.l.b16 %v275
    %v463 = vunpack.c.h.b16 %v275
    %v464 = vunpack.c.l.b16 %v276
    %v465 = vunpack.c.h.b16 %v276
    %v466 = vunpack.c.l.b16 %v277
    %v467 = vunpack.c.h.b16 %v277
    %v468 = vunpack.c.l.b16 %v278
    %v469 = vunpack.c.h.b16 %v278
    %v470 = vunpack.c.l.b16 %v279
    %v471 = vunpack.c.h.b16 %v279
    %v472 = vunpack.c.l.b16 %v280
    %v473 = vunpack.c.h.b16 %v280
    %v474 = vunpack.c.l.b16 %v281
    %v475 = vunpack.c.h.b16 %v281
    %v476 = vunpack.c.l.b16 %v282
    %v477 = vunpack.c.h.b16 %v282
    %v478 = vunpack.c.l.b16 %v283
    %v479 = vunpack.c.h.b16 %v283
    %v480 = vunpack.c.l.b16 %v284
    %v481 = vunpack.c.h.b16 %v284
    %v482 = vunpack.c.l.b16 %v285
    %v483 = vunpack.c.h.b16 %v285
    %v484 = vunpack.c.l.b16 %v286
    %v485 = vunpack.c.h.b16 %v286
    %v486 = vunpack.c.l.b16 %v287
    %v487 = vunpack.c.h.b16 %v287
    %v488 = vunpack.c.l.b16 %v288
    %v489 = vunpack.c.h.b16 %v288
    %v490 = vunpack.c.l.b16 %v289
    %v491 = vunpack.c.h.b16 %v289
    %v492 = vunpack.c.l.b16 %v290
    %v493 = vunpack.c.h.b16 %v290
    %v494 = vunpack.c.l.b16 %v291
    %v495 = vunpack.c.h.b16 %v291
    %v496 = vunpack.c.l.b16 %v292
    %v497 = vunpack.c.h.b16 %v292
    %v498 = vunpack.c.l.b16 %v293
    %v499 = vunpack.c.h.b16 %v293
    %v500 = vunpack.c.l.b16 %v294
    %v501 = vunpack.c.h.b16 %v294
    %v502 = vunpack.c.l.b16 %v295
    %v503 = vunpack.c.h.b16 %v295
    %v504 = vunpack.c.l.b16 %v296
    %v505 = vunpack.c.h.b16 %v296
    %v506 = vunpack.c.l.b16 %v297
    %v507 = vunpack.c.h.b16 %v297
    %v508 = vunpack.c.l.b16 %v298
    %v509 = vunpack.c.h.b16 %v298
    %v510 = vunpack.c.l.b16 %v299
    %v511 = vunpack.c.h.b16 %v299
    %v512 = vunpack.c.l.b16 %v300
    %v513 = vunpack.c.h.b16 %v300
    %v514 = vunpack.c.l.b16 %v301
    %v515 = vunpack.c.h.b16 %v301
    %v516 = vpack.c.b16 %v392, %v388
    %v517 = vpack.c.b16 %v393, %v389
    %v518 = vpack.c.b16 %v394, %v390
    %v519 = vpack.c.b16 %v395, %v391
    %v520 = vpack.c.b16 %v400, %v396
    %v521 = vpack.c.b16 %v401, %v397
    %v522 = vpack.c.b16 %v402, %v398
    %v523 = vpack.c.b16 %v403, %v399
    %v524 = vpack.c.b16 %v408, %v404
    %v525 = vpack.c.b16 %v409, %v405
    %v526 = vpack.c.b16 %v410, %v406
    %v527 = vpack.c.b16 %v411, %v407
    %v528 = vpack.c.b16 %v416, %v412
    %v529 = vpack.c.b16 %v417, %v413
    %v530 = vpack.c.b16 %v418, %v414
    %v531 = vpack.c.b16 %v419, %v415
    %v532 = vpack.c.b16 %v424, %v420
    %v533 = vpack.c.b16 %v425, %v421
    %v534 = vpack.c.b16 %v426, %v422
    %v535 = vpack.c.b16 %v427, %v423
    %v536 = vpack.c.b16 %v432, %v428
    %v537 = vpack.c.b16 %v433, %v429
    %v538 = vpack.c.b16 %v434, %v430
    %v539 = vpack.c.b16 %v435, %v431
    %v540 = vpack.c.b16 %v440, %v436
    %v541 = vpack.c.b16 %v441, %v437
    %v542 = vpack.c.b16 %v442, %v438
    %v543 = vpack.c.b16 %v443, %v439
    %v544 = vpack.c.b16 %v448, %v444
    %v545 = vpack.c.b16 %v449, %v445
    %v546 = vpack.c.b16 %v450, %v446
    %v547 = vpack.c.b16 %v451, %v447
    %v548 = vpack.c.b16 %v456, %v452
    %v549 = vpack.c.b16 %v457, %v453
    %v550 = vpack.c.b16 %v458, %v454
    %v551 = vpack.c.b16 %v459, %v455
    %v552 = vpack.c.b16 %v464, %v460
    %v553 = vpack.c.b16 %v465, %v461
    %v554 = vpack.c.b16 %v466, %v462
    %v555 = vpack.c.b16 %v467, %v463
    %v556 = vpack.c.b16 %v472, %v468
    %v557 = vpack.c.b16 %v473, %v469
    %v558 = vpack.c.b16 %v474, %v470
    %v559 = vpack.c.b16 %v475, %v471
    %v560 = vpack.c.b16 %v480, %v476
    %v561 = vpack.c.b16 %v481, %v477
    %v562 = vpack.c.b16 %v482, %v478
    %v563 = vpack.c.b16 %v483, %v479
    %v564 = vpack.c.b16 %v488, %v484
    %v565 = vpack.c.b16 %v489, %v485
    %v566 = vpack.c.b16 %v490, %v486
    %v567 = vpack.c.b16 %v491, %v487
    %v568 = vpack.c.b16 %v496, %v492
    %v569 = vpack.c.b16 %v497, %v493
    %v570 = vpack.c.b16 %v498, %v494
    %v571 = vpack.c.b16 %v499, %v495
    %v572 = vpack.c.b16 %v504, %v500
    %v573 = vpack.c.b16 %v505, %v501
    %v574 = vpack.c.b16 %v506, %v502
    %v575 = vpack.c.b16 %v507, %v503
    %v576 = vpack.c.b16 %v512, %v508
    %v577 = vpack.c.b16 %v513, %v509
    %v578 = vpack.c.b16 %v514, %v510
    %v579 = vpack.c.b16 %v515, %v511
    %644 = vmatprep.subr.bf16.mxu0 %v545
    %645 = vmatpush1.bf16.msra.mxu0 %v544
    %646 = vmatprep.subr.bf16.mxu0 %v541
    %647 = vmatpush1.bf16.msra.mxu0 %v540
    %648 = vmatprep.subr.bf16.mxu0 %v537
    %649 = vmatpush1.bf16.msra.mxu0 %v536
    %650 = vmatprep.subr.bf16.mxu0 %v533
    %651 = vmatpush1.bf16.msra.mxu0 %v532
    %652 = vmatprep.subr.bf16.mxu0 %v529
    %653 = vmatpush1.bf16.msra.mxu0 %v528
    %654 = vmatprep.subr.bf16.mxu0 %v525
    %655 = vmatpush1.bf16.msra.mxu0 %v524
    %656 = vmatprep.subr.bf16.mxu0 %v521
    %657 = vmatpush1.bf16.msra.mxu0 %v520
    %658 = vmatprep.subr.bf16.mxu0 %v517
    %659 = vmatpush1.bf16.msra.mxu0 %v516
    %660 = vmatprep.subr.bf16.mxu0 %v577
    %661 = vmatpush2.bf16.msra.mxu0 %v576
    %662 = vmatprep.subr.bf16.mxu0 %v573
    %663 = vmatpush2.bf16.msra.mxu0 %v572
    %664 = vmatprep.subr.bf16.mxu0 %v569
    %665 = vmatpush2.bf16.msra.mxu0 %v568
    %666 = vmatprep.subr.bf16.mxu0 %v565
    %667 = vmatpush2.bf16.msra.mxu0 %v564
    %668 = vmatprep.subr.bf16.mxu0 %v561
    %669 = vmatpush2.bf16.msra.mxu0 %v560
    %670 = vmatprep.subr.bf16.mxu0 %v557
    %671 = vmatpush2.bf16.msra.mxu0 %v556
    %672 = vmatprep.subr.bf16.mxu0 %v553
    %673 = vmatpush2.bf16.msra.mxu0 %v552
    %674 = vmatprep.subr.bf16.mxu0 %v549
    %675 = vmatpush2.bf16.msra.mxu0 %v548
    %676 = vmatprep.mubr.bf16.mxu0 %v237
    %677 = vmatmul.mubr.bf16.gmra.mxu0 %v236
    %v678 = vpop.f32.mrf.mxu0
    %v679 = vadd.f32 %v307, %v678
    %v680 = vpop.f32.mrf.mxu0
    %v681 = vadd.f32 %v311, %v680
    %v682 = vpop.f32.mrf.mxu0
    %v683 = vadd.f32 %v307, %v682
    %v684 = vpop.f32.mrf.mxu0
    %v685 = vadd.f32 %v311, %v684
    %686 = vdwg.mxu0
    %687 = vmatprep.subr.bf16.mxu0 %v547
    %688 = vmatpush1.bf16.msra.mxu0 %v546
    %689 = vmatprep.subr.bf16.mxu0 %v543
    %690 = vmatpush1.bf16.msra.mxu0 %v542
    %691 = vmatprep.subr.bf16.mxu0 %v539
    %692 = vmatpush1.bf16.msra.mxu0 %v538
    %693 = vmatprep.subr.bf16.mxu0 %v535
    %694 = vmatpush1.bf16.msra.mxu0 %v534
    %695 = vmatprep.subr.bf16.mxu0 %v531
    %696 = vmatpush1.bf16.msra.mxu0 %v530
    %697 = vmatprep.subr.bf16.mxu0 %v527
    %698 = vmatpush1.bf16.msra.mxu0 %v526
    %699 = vmatprep.subr.bf16.mxu0 %v523
    %700 = vmatpush1.bf16.msra.mxu0 %v522
    %701 = vmatprep.subr.bf16.mxu0 %v519
    %702 = vmatpush1.bf16.msra.mxu0 %v518
    %703 = vmatprep.subr.bf16.mxu0 %v579
    %704 = vmatpush2.bf16.msra.mxu0 %v578
    %705 = vmatprep.subr.bf16.mxu0 %v575
    %706 = vmatpush2.bf16.msra.mxu0 %v574
    %707 = vmatprep.subr.bf16.mxu0 %v571
    %708 = vmatpush2.bf16.msra.mxu0 %v570
    %709 = vmatprep.subr.bf16.mxu0 %v567
    %710 = vmatpush2.bf16.msra.mxu0 %v566
    %711 = vmatprep.subr.bf16.mxu0 %v563
    %712 = vmatpush2.bf16.msra.mxu0 %v562
    %713 = vmatprep.subr.bf16.mxu0 %v559
    %714 = vmatpush2.bf16.msra.mxu0 %v558
    %715 = vmatprep.subr.bf16.mxu0 %v555
    %716 = vmatpush2.bf16.msra.mxu0 %v554
    %717 = vmatprep.subr.bf16.mxu0 %v551
    %718 = vmatpush2.bf16.msra.mxu0 %v550
    %719 = vmatprep.mubr.bf16.mxu0 %v237
    %720 = vmatmul.mubr.bf16.gmra.mxu0 %v236
    %v721 = vpop.f32.mrf.mxu0
    %v722 = vadd.f32 %v315, %v721
    %v723 = vpop.f32.mrf.mxu0
    %v724 = vadd.f32 %v319, %v723
    %v725 = vpop.f32.mrf.mxu0
    %v726 = vadd.f32 %v315, %v725
    %v727 = vpop.f32.mrf.mxu0
    %v728 = vadd.f32 %v319, %v727
    %729 = vdwg.mxu0
    %v730 = vmul.f32 %v679, 0.01
    %v731 = vmul.f32 %v681, 0.01
    %v732 = vmul.f32 %v722, 0.01
    %v733 = vmul.f32 %v724, 0.01
    %v734 = vmul.f32 %v683, 0.01
    %v735 = vmul.f32 %v685, 0.01
    %v736 = vmul.f32 %v726, 0.01
    %v737 = vmul.f32 %v728, 0.01
    %v738 = vmax.f32 %v679, %v730
    %v739 = vmax.f32 %v681, %v731
    %v740 = vmax.f32 %v722, %v732
    %v741 = vmax.f32 %v724, %v733
    %v742 = vmax.f32 %v683, %v734
    %v743 = vmax.f32 %v685, %v735
    %v744 = vmax.f32 %v726, %v736
    %v745 = vmax.f32 %v728, %v737
    %v746 = vpack.c.bf16 %v742, %v738
    %v747 = vpack.c.bf16 %v743, %v739
    %v748 = vpack.c.bf16 %v744, %v740
    %v749 = vpack.c.bf16 %v745, %v741
    %v750 = vld [vmem:[#allocation10] sm:$0xff]
    %v751 = vld [vmem:[#allocation10 + $0x8] sm:$0xff]
    %v752 = vld [vmem:[#allocation10 + $0x10] sm:$0xff]
    %v753 = vld [vmem:[#allocation10 + $0x18] sm:$0xff]
    %v754 = vld [vmem:[#allocation10 + $0x20] sm:$0xff]
    %v755 = vld [vmem:[#allocation10 + $0x28] sm:$0xff]
    %v756 = vld [vmem:[#allocation10 + $0x30] sm:$0xff]
    %v757 = vld [vmem:[#allocation10 + $0x38] sm:$0xff]
    %v758 = vld [vmem:[#allocation10 + $0x40] sm:$0xff]
    %v759 = vld [vmem:[#allocation10 + $0x48] sm:$0xff]
    %v760 = vld [vmem:[#allocation10 + $0x50] sm:$0xff]
    %v761 = vld [vmem:[#allocation10 + $0x58] sm:$0xff]
    %v762 = vld [vmem:[#allocation10 + $0x60] sm:$0xff]
    %v763 = vld [vmem:[#allocation10 + $0x68] sm:$0xff]
    %v764 = vld [vmem:[#allocation10 + $0x70] sm:$0xff]
    %v765 = vld [vmem:[#allocation10 + $0x78] sm:$0xff]
    %v766 = vld [vmem:[#allocation10 + $0x80] sm:$0xff]
    %v767 = vld [vmem:[#allocation10 + $0x88] sm:$0xff]
    %v768 = vld [vmem:[#allocation10 + $0x90] sm:$0xff]
    %v769 = vld [vmem:[#allocation10 + $0x98] sm:$0xff]
    %v770 = vld [vmem:[#allocation10 + $0xa0] sm:$0xff]
    %v771 = vld [vmem:[#allocation10 + $0xa8] sm:$0xff]
    %v772 = vld [vmem:[#allocation10 + $0xb0] sm:$0xff]
    %v773 = vld [vmem:[#allocation10 + $0xb8] sm:$0xff]
    %v774 = vld [vmem:[#allocation10 + $0xc0] sm:$0xff]
    %v775 = vld [vmem:[#allocation10 + $0xc8] sm:$0xff]
    %v776 = vld [vmem:[#allocation10 + $0xd0] sm:$0xff]
    %v777 = vld [vmem:[#allocation10 + $0xd8] sm:$0xff]
    %v778 = vld [vmem:[#allocation10 + $0xe0] sm:$0xff]
    %v779 = vld [vmem:[#allocation10 + $0xe8] sm:$0xff]
    %v780 = vld [vmem:[#allocation10 + $0xf0] sm:$0xff]
    %v781 = vld [vmem:[#allocation10 + $0xf8] sm:$0xff]
    %v782 = vld [vmem:[#allocation10 + $0x100] sm:$0xff]
    %v783 = vld [vmem:[#allocation10 + $0x108] sm:$0xff]
    %v784 = vld [vmem:[#allocation10 + $0x110] sm:$0xff]
    %v785 = vld [vmem:[#allocation10 + $0x118] sm:$0xff]
    %v786 = vld [vmem:[#allocation10 + $0x120] sm:$0xff]
    %v787 = vld [vmem:[#allocation10 + $0x128] sm:$0xff]
    %v788 = vld [vmem:[#allocation10 + $0x130] sm:$0xff]
    %v789 = vld [vmem:[#allocation10 + $0x138] sm:$0xff]
    %v790 = vld [vmem:[#allocation10 + $0x140] sm:$0xff]
    %v791 = vld [vmem:[#allocation10 + $0x148] sm:$0xff]
    %v792 = vld [vmem:[#allocation10 + $0x150] sm:$0xff]
    %v793 = vld [vmem:[#allocation10 + $0x158] sm:$0xff]
    %v794 = vld [vmem:[#allocation10 + $0x160] sm:$0xff]
    %v795 = vld [vmem:[#allocation10 + $0x168] sm:$0xff]
    %v796 = vld [vmem:[#allocation10 + $0x170] sm:$0xff]
    %v797 = vld [vmem:[#allocation10 + $0x178] sm:$0xff]
    %v798 = vld [vmem:[#allocation10 + $0x180] sm:$0xff]
    %v799 = vld [vmem:[#allocation10 + $0x188] sm:$0xff]
    %v800 = vld [vmem:[#allocation10 + $0x190] sm:$0xff]
    %v801 = vld [vmem:[#allocation10 + $0x198] sm:$0xff]
    %v802 = vld [vmem:[#allocation10 + $0x1a0] sm:$0xff]
    %v803 = vld [vmem:[#allocation10 + $0x1a8] sm:$0xff]
    %v804 = vld [vmem:[#allocation10 + $0x1b0] sm:$0xff]
    %v805 = vld [vmem:[#allocation10 + $0x1b8] sm:$0xff]
    %v806 = vld [vmem:[#allocation10 + $0x1c0] sm:$0xff]
    %v807 = vld [vmem:[#allocation10 + $0x1c8] sm:$0xff]
    %v808 = vld [vmem:[#allocation10 + $0x1d0] sm:$0xff]
    %v809 = vld [vmem:[#allocation10 + $0x1d8] sm:$0xff]
    %v810 = vld [vmem:[#allocation10 + $0x1e0] sm:$0xff]
    %v811 = vld [vmem:[#allocation10 + $0x1e8] sm:$0xff]
    %v812 = vld [vmem:[#allocation10 + $0x1f0] sm:$0xff]
    %v813 = vld [vmem:[#allocation10 + $0x1f8] sm:$0xff]
    %v814 = vld [vmem:[#allocation10 + $0x200] sm:$0xff]
    %v815 = vld [vmem:[#allocation10 + $0x208] sm:$0xff]
    %v816 = vld [vmem:[#allocation10 + $0x210] sm:$0xff]
    %v817 = vld [vmem:[#allocation10 + $0x218] sm:$0xff]
    %v818 = vld [vmem:[#allocation10 + $0x220] sm:$0xff]
    %v819 = vld [vmem:[#allocation10 + $0x228] sm:$0xff]
    %v820 = vld [vmem:[#allocation10 + $0x230] sm:$0xff]
    %v821 = vld [vmem:[#allocation10 + $0x238] sm:$0xff]
    %v822 = vld [vmem:[#allocation10 + $0x240] sm:$0xff]
    %v823 = vld [vmem:[#allocation10 + $0x248] sm:$0xff]
    %v824 = vld [vmem:[#allocation10 + $0x250] sm:$0xff]
    %v825 = vld [vmem:[#allocation10 + $0x258] sm:$0xff]
    %v826 = vld [vmem:[#allocation10 + $0x260] sm:$0xff]
    %v827 = vld [vmem:[#allocation10 + $0x268] sm:$0xff]
    %v828 = vld [vmem:[#allocation10 + $0x270] sm:$0xff]
    %v829 = vld [vmem:[#allocation10 + $0x278] sm:$0xff]
    %v830 = vld [vmem:[#allocation10 + $0x280] sm:$0xff]
    %v831 = vld [vmem:[#allocation10 + $0x288] sm:$0xff]
    %v832 = vld [vmem:[#allocation10 + $0x290] sm:$0xff]
    %v833 = vld [vmem:[#allocation10 + $0x298] sm:$0xff]
    %v834 = vld [vmem:[#allocation10 + $0x2a0] sm:$0xff]
    %v835 = vld [vmem:[#allocation10 + $0x2a8] sm:$0xff]
    %v836 = vld [vmem:[#allocation10 + $0x2b0] sm:$0xff]
    %v837 = vld [vmem:[#allocation10 + $0x2b8] sm:$0xff]
    %v838 = vld [vmem:[#allocation10 + $0x2c0] sm:$0xff]
    %v839 = vld [vmem:[#allocation10 + $0x2c8] sm:$0xff]
    %v840 = vld [vmem:[#allocation10 + $0x2d0] sm:$0xff]
    %v841 = vld [vmem:[#allocation10 + $0x2d8] sm:$0xff]
    %v842 = vld [vmem:[#allocation10 + $0x2e0] sm:$0xff]
    %v843 = vld [vmem:[#allocation10 + $0x2e8] sm:$0xff]
    %v844 = vld [vmem:[#allocation10 + $0x2f0] sm:$0xff]
    %v845 = vld [vmem:[#allocation10 + $0x2f8] sm:$0xff]
    %v846 = vld [vmem:[#allocation10 + $0x300] sm:$0xff]
    %v847 = vld [vmem:[#allocation10 + $0x308] sm:$0xff]
    %v848 = vld [vmem:[#allocation10 + $0x310] sm:$0xff]
    %v849 = vld [vmem:[#allocation10 + $0x318] sm:$0xff]
    %v850 = vld [vmem:[#allocation10 + $0x320] sm:$0xff]
    %v851 = vld [vmem:[#allocation10 + $0x328] sm:$0xff]
    %v852 = vld [vmem:[#allocation10 + $0x330] sm:$0xff]
    %v853 = vld [vmem:[#allocation10 + $0x338] sm:$0xff]
    %v854 = vld [vmem:[#allocation10 + $0x340] sm:$0xff]
    %v855 = vld [vmem:[#allocation10 + $0x348] sm:$0xff]
    %v856 = vld [vmem:[#allocation10 + $0x350] sm:$0xff]
    %v857 = vld [vmem:[#allocation10 + $0x358] sm:$0xff]
    %v858 = vld [vmem:[#allocation10 + $0x360] sm:$0xff]
    %v859 = vld [vmem:[#allocation10 + $0x368] sm:$0xff]
    %v860 = vld [vmem:[#allocation10 + $0x370] sm:$0xff]
    %v861 = vld [vmem:[#allocation10 + $0x378] sm:$0xff]
    %v862 = vld [vmem:[#allocation10 + $0x380] sm:$0xff]
    %v863 = vld [vmem:[#allocation10 + $0x388] sm:$0xff]
    %v864 = vld [vmem:[#allocation10 + $0x390] sm:$0xff]
    %v865 = vld [vmem:[#allocation10 + $0x398] sm:$0xff]
    %v866 = vld [vmem:[#allocation10 + $0x3a0] sm:$0xff]
    %v867 = vld [vmem:[#allocation10 + $0x3a8] sm:$0xff]
    %v868 = vld [vmem:[#allocation10 + $0x3b0] sm:$0xff]
    %v869 = vld [vmem:[#allocation10 + $0x3b8] sm:$0xff]
    %v870 = vld [vmem:[#allocation10 + $0x3c0] sm:$0xff]
    %v871 = vld [vmem:[#allocation10 + $0x3c8] sm:$0xff]
    %v872 = vld [vmem:[#allocation10 + $0x3d0] sm:$0xff]
    %v873 = vld [vmem:[#allocation10 + $0x3d8] sm:$0xff]
    %v874 = vld [vmem:[#allocation10 + $0x3e0] sm:$0xff]
    %v875 = vld [vmem:[#allocation10 + $0x3e8] sm:$0xff]
    %v876 = vld [vmem:[#allocation10 + $0x3f0] sm:$0xff]
    %v877 = vld [vmem:[#allocation10 + $0x3f8] sm:$0xff]
    %v878 = vld [vmem:[#allocation10 + $0x400] sm:$0xff]
    %v879 = vld [vmem:[#allocation10 + $0x408] sm:$0xff]
    %v880 = vld [vmem:[#allocation10 + $0x410] sm:$0xff]
    %v881 = vld [vmem:[#allocation10 + $0x418] sm:$0xff]
    %v882 = vld [vmem:[#allocation10 + $0x420] sm:$0xff]
    %v883 = vld [vmem:[#allocation10 + $0x428] sm:$0xff]
    %v884 = vld [vmem:[#allocation10 + $0x430] sm:$0xff]
    %v885 = vld [vmem:[#allocation10 + $0x438] sm:$0xff]
    %v886 = vld [vmem:[#allocation10 + $0x440] sm:$0xff]
    %v887 = vld [vmem:[#allocation10 + $0x448] sm:$0xff]
    %v888 = vld [vmem:[#allocation10 + $0x450] sm:$0xff]
    %v889 = vld [vmem:[#allocation10 + $0x458] sm:$0xff]
    %v890 = vld [vmem:[#allocation10 + $0x460] sm:$0xff]
    %v891 = vld [vmem:[#allocation10 + $0x468] sm:$0xff]
    %v892 = vld [vmem:[#allocation10 + $0x470] sm:$0xff]
    %v893 = vld [vmem:[#allocation10 + $0x478] sm:$0xff]
    %v894 = vld [vmem:[#allocation10 + $0x480] sm:$0xff]
    %v895 = vld [vmem:[#allocation10 + $0x488] sm:$0xff]
    %v896 = vld [vmem:[#allocation10 + $0x490] sm:$0xff]
    %v897 = vld [vmem:[#allocation10 + $0x498] sm:$0xff]
    %v898 = vld [vmem:[#allocation10 + $0x4a0] sm:$0xff]
    %v899 = vld [vmem:[#allocation10 + $0x4a8] sm:$0xff]
    %v900 = vld [vmem:[#allocation10 + $0x4b0] sm:$0xff]
    %v901 = vld [vmem:[#allocation10 + $0x4b8] sm:$0xff]
    %v902 = vld [vmem:[#allocation10 + $0x4c0] sm:$0xff]
    %v903 = vld [vmem:[#allocation10 + $0x4c8] sm:$0xff]
    %v904 = vld [vmem:[#allocation10 + $0x4d0] sm:$0xff]
    %v905 = vld [vmem:[#allocation10 + $0x4d8] sm:$0xff]
    %v906 = vld [vmem:[#allocation10 + $0x4e0] sm:$0xff]
    %v907 = vld [vmem:[#allocation10 + $0x4e8] sm:$0xff]
    %v908 = vld [vmem:[#allocation10 + $0x4f0] sm:$0xff]
    %v909 = vld [vmem:[#allocation10 + $0x4f8] sm:$0xff]
    %v910 = vld [vmem:[#allocation10 + $0x500] sm:$0xff]
    %v911 = vld [vmem:[#allocation10 + $0x508] sm:$0xff]
    %v912 = vld [vmem:[#allocation10 + $0x510] sm:$0xff]
    %v913 = vld [vmem:[#allocation10 + $0x518] sm:$0xff]
    %v914 = vld [vmem:[#allocation10 + $0x520] sm:$0xff]
    %v915 = vld [vmem:[#allocation10 + $0x528] sm:$0xff]
    %v916 = vld [vmem:[#allocation10 + $0x530] sm:$0xff]
    %v917 = vld [vmem:[#allocation10 + $0x538] sm:$0xff]
    %v918 = vld [vmem:[#allocation10 + $0x540] sm:$0xff]
    %v919 = vld [vmem:[#allocation10 + $0x548] sm:$0xff]
    %v920 = vld [vmem:[#allocation10 + $0x550] sm:$0xff]
    %v921 = vld [vmem:[#allocation10 + $0x558] sm:$0xff]
    %v922 = vld [vmem:[#allocation10 + $0x560] sm:$0xff]
    %v923 = vld [vmem:[#allocation10 + $0x568] sm:$0xff]
    %v924 = vld [vmem:[#allocation10 + $0x570] sm:$0xff]
    %v925 = vld [vmem:[#allocation10 + $0x578] sm:$0xff]
    %v926 = vld [vmem:[#allocation10 + $0x580] sm:$0xff]
    %v927 = vld [vmem:[#allocation10 + $0x588] sm:$0xff]
    %v928 = vld [vmem:[#allocation10 + $0x590] sm:$0xff]
    %v929 = vld [vmem:[#allocation10 + $0x598] sm:$0xff]
    %v930 = vld [vmem:[#allocation10 + $0x5a0] sm:$0xff]
    %v931 = vld [vmem:[#allocation10 + $0x5a8] sm:$0xff]
    %v932 = vld [vmem:[#allocation10 + $0x5b0] sm:$0xff]
    %v933 = vld [vmem:[#allocation10 + $0x5b8] sm:$0xff]
    %v934 = vld [vmem:[#allocation10 + $0x5c0] sm:$0xff]
    %v935 = vld [vmem:[#allocation10 + $0x5c8] sm:$0xff]
    %v936 = vld [vmem:[#allocation10 + $0x5d0] sm:$0xff]
    %v937 = vld [vmem:[#allocation10 + $0x5d8] sm:$0xff]
    %v938 = vld [vmem:[#allocation10 + $0x5e0] sm:$0xff]
    %v939 = vld [vmem:[#allocation10 + $0x5e8] sm:$0xff]
    %v940 = vld [vmem:[#allocation10 + $0x5f0] sm:$0xff]
    %v941 = vld [vmem:[#allocation10 + $0x5f8] sm:$0xff]
    %v942 = vld [vmem:[#allocation10 + $0x600] sm:$0xff]
    %v943 = vld [vmem:[#allocation10 + $0x608] sm:$0xff]
    %v944 = vld [vmem:[#allocation10 + $0x610] sm:$0xff]
    %v945 = vld [vmem:[#allocation10 + $0x618] sm:$0xff]
    %v946 = vld [vmem:[#allocation10 + $0x620] sm:$0xff]
    %v947 = vld [vmem:[#allocation10 + $0x628] sm:$0xff]
    %v948 = vld [vmem:[#allocation10 + $0x630] sm:$0xff]
    %v949 = vld [vmem:[#allocation10 + $0x638] sm:$0xff]
    %v950 = vld [vmem:[#allocation10 + $0x640] sm:$0xff]
    %v951 = vld [vmem:[#allocation10 + $0x648] sm:$0xff]
    %v952 = vld [vmem:[#allocation10 + $0x650] sm:$0xff]
    %v953 = vld [vmem:[#allocation10 + $0x658] sm:$0xff]
    %v954 = vld [vmem:[#allocation10 + $0x660] sm:$0xff]
    %v955 = vld [vmem:[#allocation10 + $0x668] sm:$0xff]
    %v956 = vld [vmem:[#allocation10 + $0x670] sm:$0xff]
    %v957 = vld [vmem:[#allocation10 + $0x678] sm:$0xff]
    %v958 = vld [vmem:[#allocation10 + $0x680] sm:$0xff]
    %v959 = vld [vmem:[#allocation10 + $0x688] sm:$0xff]
    %v960 = vld [vmem:[#allocation10 + $0x690] sm:$0xff]
    %v961 = vld [vmem:[#allocation10 + $0x698] sm:$0xff]
    %v962 = vld [vmem:[#allocation10 + $0x6a0] sm:$0xff]
    %v963 = vld [vmem:[#allocation10 + $0x6a8] sm:$0xff]
    %v964 = vld [vmem:[#allocation10 + $0x6b0] sm:$0xff]
    %v965 = vld [vmem:[#allocation10 + $0x6b8] sm:$0xff]
    %v966 = vld [vmem:[#allocation10 + $0x6c0] sm:$0xff]
    %v967 = vld [vmem:[#allocation10 + $0x6c8] sm:$0xff]
    %v968 = vld [vmem:[#allocation10 + $0x6d0] sm:$0xff]
    %v969 = vld [vmem:[#allocation10 + $0x6d8] sm:$0xff]
    %v970 = vld [vmem:[#allocation10 + $0x6e0] sm:$0xff]
    %v971 = vld [vmem:[#allocation10 + $0x6e8] sm:$0xff]
    %v972 = vld [vmem:[#allocation10 + $0x6f0] sm:$0xff]
    %v973 = vld [vmem:[#allocation10 + $0x6f8] sm:$0xff]
    %v974 = vld [vmem:[#allocation10 + $0x700] sm:$0xff]
    %v975 = vld [vmem:[#allocation10 + $0x708] sm:$0xff]
    %v976 = vld [vmem:[#allocation10 + $0x710] sm:$0xff]
    %v977 = vld [vmem:[#allocation10 + $0x718] sm:$0xff]
    %v978 = vld [vmem:[#allocation10 + $0x720] sm:$0xff]
    %v979 = vld [vmem:[#allocation10 + $0x728] sm:$0xff]
    %v980 = vld [vmem:[#allocation10 + $0x730] sm:$0xff]
    %v981 = vld [vmem:[#allocation10 + $0x738] sm:$0xff]
    %v982 = vld [vmem:[#allocation10 + $0x740] sm:$0xff]
    %v983 = vld [vmem:[#allocation10 + $0x748] sm:$0xff]
    %v984 = vld [vmem:[#allocation10 + $0x750] sm:$0xff]
    %v985 = vld [vmem:[#allocation10 + $0x758] sm:$0xff]
    %v986 = vld [vmem:[#allocation10 + $0x760] sm:$0xff]
    %v987 = vld [vmem:[#allocation10 + $0x768] sm:$0xff]
    %v988 = vld [vmem:[#allocation10 + $0x770] sm:$0xff]
    %v989 = vld [vmem:[#allocation10 + $0x778] sm:$0xff]
    %v990 = vld [vmem:[#allocation10 + $0x780] sm:$0xff]
    %v991 = vld [vmem:[#allocation10 + $0x788] sm:$0xff]
    %v992 = vld [vmem:[#allocation10 + $0x790] sm:$0xff]
    %v993 = vld [vmem:[#allocation10 + $0x798] sm:$0xff]
    %v994 = vld [vmem:[#allocation10 + $0x7a0] sm:$0xff]
    %v995 = vld [vmem:[#allocation10 + $0x7a8] sm:$0xff]
    %v996 = vld [vmem:[#allocation10 + $0x7b0] sm:$0xff]
    %v997 = vld [vmem:[#allocation10 + $0x7b8] sm:$0xff]
    %v998 = vld [vmem:[#allocation10 + $0x7c0] sm:$0xff]
    %v999 = vld [vmem:[#allocation10 + $0x7c8] sm:$0xff]
    %v1000 = vld [vmem:[#allocation10 + $0x7d0] sm:$0xff]
    %v1001 = vld [vmem:[#allocation10 + $0x7d8] sm:$0xff]
    %v1002 = vld [vmem:[#allocation10 + $0x7e0] sm:$0xff]
    %v1003 = vld [vmem:[#allocation10 + $0x7e8] sm:$0xff]
    %v1004 = vld [vmem:[#allocation10 + $0x7f0] sm:$0xff]
    %v1005 = vld [vmem:[#allocation10 + $0x7f8] sm:$0xff]
    %v1006 = vld [vmem:[%s6] sm:$0xff]
    %v1008 = vlaneseq
    %v1009 = vshrl.u32 %v1008, 7
    %v1010 = vsub.s32 0, %v1009
    %v1011 = vrot.slane %v1006, %v1010
    %v1012 = vlaneseq
    %v1013 = vshrl.u32 %v1012, 7
    %v1014 = vsub.s32 1, %v1013
    %v1015 = vrot.slane %v1006, %v1014
    %v1016 = vlaneseq
    %v1017 = vshrl.u32 %v1016, 7
    %v1018 = vsub.s32 2, %v1017
    %v1019 = vrot.slane %v1006, %v1018
    %v1020 = vlaneseq
    %v1021 = vshrl.u32 %v1020, 7
    %v1022 = vsub.s32 3, %v1021
    %v1023 = vrot.slane %v1006, %v1022
    %v1024 = vlaneseq
    %v1025 = vshrl.u32 %v1024, 7
    %v1026 = vsub.s32 4, %v1025
    %v1027 = vrot.slane %v1006, %v1026
    %v1028 = vlaneseq
    %v1029 = vshrl.u32 %v1028, 7
    %v1030 = vsub.s32 5, %v1029
    %v1031 = vrot.slane %v1006, %v1030
    %v1032 = vlaneseq
    %v1033 = vshrl.u32 %v1032, 7
    %v1034 = vsub.s32 6, %v1033
    %v1035 = vrot.slane %v1006, %v1034
    %v1036 = vlaneseq
    %v1037 = vshrl.u32 %v1036, 7
    %v1038 = vsub.s32 7, %v1037
    %v1039 = vrot.slane %v1006, %v1038
    %v1304 = vunpack.c.l.b16 %v750
    %v1305 = vunpack.c.h.b16 %v750
    %v1306 = vunpack.c.l.b16 %v751
    %v1307 = vunpack.c.h.b16 %v751
    %v1308 = vunpack.c.l.b16 %v752
    %v1309 = vunpack.c.h.b16 %v752
    %v1310 = vunpack.c.l.b16 %v753
    %v1311 = vunpack.c.h.b16 %v753
    %v1312 = vunpack.c.l.b16 %v754
    %v1313 = vunpack.c.h.b16 %v754
    %v1314 = vunpack.c.l.b16 %v755
    %v1315 = vunpack.c.h.b16 %v755
    %v1316 = vunpack.c.l.b16 %v756
    %v1317 = vunpack.c.h.b16 %v756
    %v1318 = vunpack.c.l.b16 %v757
    %v1319 = vunpack.c.h.b16 %v757
    %v1320 = vunpack.c.l.b16 %v758
    %v1321 = vunpack.c.h.b16 %v758
    %v1322 = vunpack.c.l.b16 %v759
    %v1323 = vunpack.c.h.b16 %v759
    %v1324 = vunpack.c.l.b16 %v760
    %v1325 = vunpack.c.h.b16 %v760
    %v1326 = vunpack.c.l.b16 %v761
    %v1327 = vunpack.c.h.b16 %v761
    %v1328 = vunpack.c.l.b16 %v762
    %v1329 = vunpack.c.h.b16 %v762
    %v1330 = vunpack.c.l.b16 %v763
    %v1331 = vunpack.c.h.b16 %v763
    %v1332 = vunpack.c.l.b16 %v764
    %v1333 = vunpack.c.h.b16 %v764
    %v1334 = vunpack.c.l.b16 %v765
    %v1335 = vunpack.c.h.b16 %v765
    %v1336 = vunpack.c.l.b16 %v766
    %v1337 = vunpack.c.h.b16 %v766
    %v1338 = vunpack.c.l.b16 %v767
    %v1339 = vunpack.c.h.b16 %v767
    %v1340 = vunpack.c.l.b16 %v768
    %v1341 = vunpack.c.h.b16 %v768
    %v1342 = vunpack.c.l.b16 %v769
    %v1343 = vunpack.c.h.b16 %v769
    %v1344 = vunpack.c.l.b16 %v770
    %v1345 = vunpack.c.h.b16 %v770
    %v1346 = vunpack.c.l.b16 %v771
    %v1347 = vunpack.c.h.b16 %v771
    %v1348 = vunpack.c.l.b16 %v772
    %v1349 = vunpack.c.h.b16 %v772
    %v1350 = vunpack.c.l.b16 %v773
    %v1351 = vunpack.c.h.b16 %v773
    %v1352 = vunpack.c.l.b16 %v774
    %v1353 = vunpack.c.h.b16 %v774
    %v1354 = vunpack.c.l.b16 %v775
    %v1355 = vunpack.c.h.b16 %v775
    %v1356 = vunpack.c.l.b16 %v776
    %v1357 = vunpack.c.h.b16 %v776
    %v1358 = vunpack.c.l.b16 %v777
    %v1359 = vunpack.c.h.b16 %v777
    %v1360 = vunpack.c.l.b16 %v778
    %v1361 = vunpack.c.h.b16 %v778
    %v1362 = vunpack.c.l.b16 %v779
    %v1363 = vunpack.c.h.b16 %v779
    %v1364 = vunpack.c.l.b16 %v780
    %v1365 = vunpack.c.h.b16 %v780
    %v1366 = vunpack.c.l.b16 %v781
    %v1367 = vunpack.c.h.b16 %v781
    %v1368 = vunpack.c.l.b16 %v782
    %v1369 = vunpack.c.h.b16 %v782
    %v1370 = vunpack.c.l.b16 %v783
    %v1371 = vunpack.c.h.b16 %v783
    %v1372 = vunpack.c.l.b16 %v784
    %v1373 = vunpack.c.h.b16 %v784
    %v1374 = vunpack.c.l.b16 %v785
    %v1375 = vunpack.c.h.b16 %v785
    %v1376 = vunpack.c.l.b16 %v786
    %v1377 = vunpack.c.h.b16 %v786
    %v1378 = vunpack.c.l.b16 %v787
    %v1379 = vunpack.c.h.b16 %v787
    %v1380 = vunpack.c.l.b16 %v788
    %v1381 = vunpack.c.h.b16 %v788
    %v1382 = vunpack.c.l.b16 %v789
    %v1383 = vunpack.c.h.b16 %v789
    %v1384 = vunpack.c.l.b16 %v790
    %v1385 = vunpack.c.h.b16 %v790
    %v1386 = vunpack.c.l.b16 %v791
    %v1387 = vunpack.c.h.b16 %v791
    %v1388 = vunpack.c.l.b16 %v792
    %v1389 = vunpack.c.h.b16 %v792
    %v1390 = vunpack.c.l.b16 %v793
    %v1391 = vunpack.c.h.b16 %v793
    %v1392 = vunpack.c.l.b16 %v794
    %v1393 = vunpack.c.h.b16 %v794
    %v1394 = vunpack.c.l.b16 %v795
    %v1395 = vunpack.c.h.b16 %v795
    %v1396 = vunpack.c.l.b16 %v796
    %v1397 = vunpack.c.h.b16 %v796
    %v1398 = vunpack.c.l.b16 %v797
    %v1399 = vunpack.c.h.b16 %v797
    %v1400 = vunpack.c.l.b16 %v798
    %v1401 = vunpack.c.h.b16 %v798
    %v1402 = vunpack.c.l.b16 %v799
    %v1403 = vunpack.c.h.b16 %v799
    %v1404 = vunpack.c.l.b16 %v800
    %v1405 = vunpack.c.h.b16 %v800
    %v1406 = vunpack.c.l.b16 %v801
    %v1407 = vunpack.c.h.b16 %v801
    %v1408 = vunpack.c.l.b16 %v802
    %v1409 = vunpack.c.h.b16 %v802
    %v1410 = vunpack.c.l.b16 %v803
    %v1411 = vunpack.c.h.b16 %v803
    %v1412 = vunpack.c.l.b16 %v804
    %v1413 = vunpack.c.h.b16 %v804
    %v1414 = vunpack.c.l.b16 %v805
    %v1415 = vunpack.c.h.b16 %v805
    %v1416 = vunpack.c.l.b16 %v806
    %v1417 = vunpack.c.h.b16 %v806
    %v1418 = vunpack.c.l.b16 %v807
    %v1419 = vunpack.c.h.b16 %v807
    %v1420 = vunpack.c.l.b16 %v808
    %v1421 = vunpack.c.h.b16 %v808
    %v1422 = vunpack.c.l.b16 %v809
    %v1423 = vunpack.c.h.b16 %v809
    %v1424 = vunpack.c.l.b16 %v810
    %v1425 = vunpack.c.h.b16 %v810
    %v1426 = vunpack.c.l.b16 %v811
    %v1427 = vunpack.c.h.b16 %v811
    %v1428 = vunpack.c.l.b16 %v812
    %v1429 = vunpack.c.h.b16 %v812
    %v1430 = vunpack.c.l.b16 %v813
    %v1431 = vunpack.c.h.b16 %v813
    %v1432 = vunpack.c.l.b16 %v814
    %v1433 = vunpack.c.h.b16 %v814
    %v1434 = vunpack.c.l.b16 %v815
    %v1435 = vunpack.c.h.b16 %v815
    %v1436 = vunpack.c.l.b16 %v816
    %v1437 = vunpack.c.h.b16 %v816
    %v1438 = vunpack.c.l.b16 %v817
    %v1439 = vunpack.c.h.b16 %v817
    %v1440 = vunpack.c.l.b16 %v818
    %v1441 = vunpack.c.h.b16 %v818
    %v1442 = vunpack.c.l.b16 %v819
    %v1443 = vunpack.c.h.b16 %v819
    %v1444 = vunpack.c.l.b16 %v820
    %v1445 = vunpack.c.h.b16 %v820
    %v1446 = vunpack.c.l.b16 %v821
    %v1447 = vunpack.c.h.b16 %v821
    %v1448 = vunpack.c.l.b16 %v822
    %v1449 = vunpack.c.h.b16 %v822
    %v1450 = vunpack.c.l.b16 %v823
    %v1451 = vunpack.c.h.b16 %v823
    %v1452 = vunpack.c.l.b16 %v824
    %v1453 = vunpack.c.h.b16 %v824
    %v1454 = vunpack.c.l.b16 %v825
    %v1455 = vunpack.c.h.b16 %v825
    %v1456 = vunpack.c.l.b16 %v826
    %v1457 = vunpack.c.h.b16 %v826
    %v1458 = vunpack.c.l.b16 %v827
    %v1459 = vunpack.c.h.b16 %v827
    %v1460 = vunpack.c.l.b16 %v828
    %v1461 = vunpack.c.h.b16 %v828
    %v1462 = vunpack.c.l.b16 %v829
    %v1463 = vunpack.c.h.b16 %v829
    %v1464 = vunpack.c.l.b16 %v830
    %v1465 = vunpack.c.h.b16 %v830
    %v1466 = vunpack.c.l.b16 %v831
    %v1467 = vunpack.c.h.b16 %v831
    %v1468 = vunpack.c.l.b16 %v832
    %v1469 = vunpack.c.h.b16 %v832
    %v1470 = vunpack.c.l.b16 %v833
    %v1471 = vunpack.c.h.b16 %v833
    %v1472 = vunpack.c.l.b16 %v834
    %v1473 = vunpack.c.h.b16 %v834
    %v1474 = vunpack.c.l.b16 %v835
    %v1475 = vunpack.c.h.b16 %v835
    %v1476 = vunpack.c.l.b16 %v836
    %v1477 = vunpack.c.h.b16 %v836
    %v1478 = vunpack.c.l.b16 %v837
    %v1479 = vunpack.c.h.b16 %v837
    %v1480 = vunpack.c.l.b16 %v838
    %v1481 = vunpack.c.h.b16 %v838
    %v1482 = vunpack.c.l.b16 %v839
    %v1483 = vunpack.c.h.b16 %v839
    %v1484 = vunpack.c.l.b16 %v840
    %v1485 = vunpack.c.h.b16 %v840
    %v1486 = vunpack.c.l.b16 %v841
    %v1487 = vunpack.c.h.b16 %v841
    %v1488 = vunpack.c.l.b16 %v842
    %v1489 = vunpack.c.h.b16 %v842
    %v1490 = vunpack.c.l.b16 %v843
    %v1491 = vunpack.c.h.b16 %v843
    %v1492 = vunpack.c.l.b16 %v844
    %v1493 = vunpack.c.h.b16 %v844
    %v1494 = vunpack.c.l.b16 %v845
    %v1495 = vunpack.c.h.b16 %v845
    %v1496 = vunpack.c.l.b16 %v846
    %v1497 = vunpack.c.h.b16 %v846
    %v1498 = vunpack.c.l.b16 %v847
    %v1499 = vunpack.c.h.b16 %v847
    %v1500 = vunpack.c.l.b16 %v848
    %v1501 = vunpack.c.h.b16 %v848
    %v1502 = vunpack.c.l.b16 %v849
    %v1503 = vunpack.c.h.b16 %v849
    %v1504 = vunpack.c.l.b16 %v850
    %v1505 = vunpack.c.h.b16 %v850
    %v1506 = vunpack.c.l.b16 %v851
    %v1507 = vunpack.c.h.b16 %v851
    %v1508 = vunpack.c.l.b16 %v852
    %v1509 = vunpack.c.h.b16 %v852
    %v1510 = vunpack.c.l.b16 %v853
    %v1511 = vunpack.c.h.b16 %v853
    %v1512 = vunpack.c.l.b16 %v854
    %v1513 = vunpack.c.h.b16 %v854
    %v1514 = vunpack.c.l.b16 %v855
    %v1515 = vunpack.c.h.b16 %v855
    %v1516 = vunpack.c.l.b16 %v856
    %v1517 = vunpack.c.h.b16 %v856
    %v1518 = vunpack.c.l.b16 %v857
    %v1519 = vunpack.c.h.b16 %v857
    %v1520 = vunpack.c.l.b16 %v858
    %v1521 = vunpack.c.h.b16 %v858
    %v1522 = vunpack.c.l.b16 %v859
    %v1523 = vunpack.c.h.b16 %v859
    %v1524 = vunpack.c.l.b16 %v860
    %v1525 = vunpack.c.h.b16 %v860
    %v1526 = vunpack.c.l.b16 %v861
    %v1527 = vunpack.c.h.b16 %v861
    %v1528 = vunpack.c.l.b16 %v862
    %v1529 = vunpack.c.h.b16 %v862
    %v1530 = vunpack.c.l.b16 %v863
    %v1531 = vunpack.c.h.b16 %v863
    %v1532 = vunpack.c.l.b16 %v864
    %v1533 = vunpack.c.h.b16 %v864
    %v1534 = vunpack.c.l.b16 %v865
    %v1535 = vunpack.c.h.b16 %v865
    %v1536 = vunpack.c.l.b16 %v866
    %v1537 = vunpack.c.h.b16 %v866
    %v1538 = vunpack.c.l.b16 %v867
    %v1539 = vunpack.c.h.b16 %v867
    %v1540 = vunpack.c.l.b16 %v868
    %v1541 = vunpack.c.h.b16 %v868
    %v1542 = vunpack.c.l.b16 %v869
    %v1543 = vunpack.c.h.b16 %v869
    %v1544 = vunpack.c.l.b16 %v870
    %v1545 = vunpack.c.h.b16 %v870
    %v1546 = vunpack.c.l.b16 %v871
    %v1547 = vunpack.c.h.b16 %v871
    %v1548 = vunpack.c.l.b16 %v872
    %v1549 = vunpack.c.h.b16 %v872
    %v1550 = vunpack.c.l.b16 %v873
    %v1551 = vunpack.c.h.b16 %v873
    %v1552 = vunpack.c.l.b16 %v874
    %v1553 = vunpack.c.h.b16 %v874
    %v1554 = vunpack.c.l.b16 %v875
    %v1555 = vunpack.c.h.b16 %v875
    %v1556 = vunpack.c.l.b16 %v876
    %v1557 = vunpack.c.h.b16 %v876
    %v1558 = vunpack.c.l.b16 %v877
    %v1559 = vunpack.c.h.b16 %v877
    %v1560 = vunpack.c.l.b16 %v878
    %v1561 = vunpack.c.h.b16 %v878
    %v1562 = vunpack.c.l.b16 %v879
    %v1563 = vunpack.c.h.b16 %v879
    %v1564 = vunpack.c.l.b16 %v880
    %v1565 = vunpack.c.h.b16 %v880
    %v1566 = vunpack.c.l.b16 %v881
    %v1567 = vunpack.c.h.b16 %v881
    %v1568 = vunpack.c.l.b16 %v882
    %v1569 = vunpack.c.h.b16 %v882
    %v1570 = vunpack.c.l.b16 %v883
    %v1571 = vunpack.c.h.b16 %v883
    %v1572 = vunpack.c.l.b16 %v884
    %v1573 = vunpack.c.h.b16 %v884
    %v1574 = vunpack.c.l.b16 %v885
    %v1575 = vunpack.c.h.b16 %v885
    %v1576 = vunpack.c.l.b16 %v886
    %v1577 = vunpack.c.h.b16 %v886
    %v1578 = vunpack.c.l.b16 %v887
    %v1579 = vunpack.c.h.b16 %v887
    %v1580 = vunpack.c.l.b16 %v888
    %v1581 = vunpack.c.h.b16 %v888
    %v1582 = vunpack.c.l.b16 %v889
    %v1583 = vunpack.c.h.b16 %v889
    %v1584 = vunpack.c.l.b16 %v890
    %v1585 = vunpack.c.h.b16 %v890
    %v1586 = vunpack.c.l.b16 %v891
    %v1587 = vunpack.c.h.b16 %v891
    %v1588 = vunpack.c.l.b16 %v892
    %v1589 = vunpack.c.h.b16 %v892
    %v1590 = vunpack.c.l.b16 %v893
    %v1591 = vunpack.c.h.b16 %v893
    %v1592 = vunpack.c.l.b16 %v894
    %v1593 = vunpack.c.h.b16 %v894
    %v1594 = vunpack.c.l.b16 %v895
    %v1595 = vunpack.c.h.b16 %v895
    %v1596 = vunpack.c.l.b16 %v896
    %v1597 = vunpack.c.h.b16 %v896
    %v1598 = vunpack.c.l.b16 %v897
    %v1599 = vunpack.c.h.b16 %v897
    %v1600 = vunpack.c.l.b16 %v898
    %v1601 = vunpack.c.h.b16 %v898
    %v1602 = vunpack.c.l.b16 %v899
    %v1603 = vunpack.c.h.b16 %v899
    %v1604 = vunpack.c.l.b16 %v900
    %v1605 = vunpack.c.h.b16 %v900
    %v1606 = vunpack.c.l.b16 %v901
    %v1607 = vunpack.c.h.b16 %v901
    %v1608 = vunpack.c.l.b16 %v902
    %v1609 = vunpack.c.h.b16 %v902
    %v1610 = vunpack.c.l.b16 %v903
    %v1611 = vunpack.c.h.b16 %v903
    %v1612 = vunpack.c.l.b16 %v904
    %v1613 = vunpack.c.h.b16 %v904
    %v1614 = vunpack.c.l.b16 %v905
    %v1615 = vunpack.c.h.b16 %v905
    %v1616 = vunpack.c.l.b16 %v906
    %v1617 = vunpack.c.h.b16 %v906
    %v1618 = vunpack.c.l.b16 %v907
    %v1619 = vunpack.c.h.b16 %v907
    %v1620 = vunpack.c.l.b16 %v908
    %v1621 = vunpack.c.h.b16 %v908
    %v1622 = vunpack.c.l.b16 %v909
    %v1623 = vunpack.c.h.b16 %v909
    %v1624 = vunpack.c.l.b16 %v910
    %v1625 = vunpack.c.h.b16 %v910
    %v1626 = vunpack.c.l.b16 %v911
    %v1627 = vunpack.c.h.b16 %v911
    %v1628 = vunpack.c.l.b16 %v912
    %v1629 = vunpack.c.h.b16 %v912
    %v1630 = vunpack.c.l.b16 %v913
    %v1631 = vunpack.c.h.b16 %v913
    %v1632 = vunpack.c.l.b16 %v914
    %v1633 = vunpack.c.h.b16 %v914
    %v1634 = vunpack.c.l.b16 %v915
    %v1635 = vunpack.c.h.b16 %v915
    %v1636 = vunpack.c.l.b16 %v916
    %v1637 = vunpack.c.h.b16 %v916
    %v1638 = vunpack.c.l.b16 %v917
    %v1639 = vunpack.c.h.b16 %v917
    %v1640 = vunpack.c.l.b16 %v918
    %v1641 = vunpack.c.h.b16 %v918
    %v1642 = vunpack.c.l.b16 %v919
    %v1643 = vunpack.c.h.b16 %v919
    %v1644 = vunpack.c.l.b16 %v920
    %v1645 = vunpack.c.h.b16 %v920
    %v1646 = vunpack.c.l.b16 %v921
    %v1647 = vunpack.c.h.b16 %v921
    %v1648 = vunpack.c.l.b16 %v922
    %v1649 = vunpack.c.h.b16 %v922
    %v1650 = vunpack.c.l.b16 %v923
    %v1651 = vunpack.c.h.b16 %v923
    %v1652 = vunpack.c.l.b16 %v924
    %v1653 = vunpack.c.h.b16 %v924
    %v1654 = vunpack.c.l.b16 %v925
    %v1655 = vunpack.c.h.b16 %v925
    %v1656 = vunpack.c.l.b16 %v926
    %v1657 = vunpack.c.h.b16 %v926
    %v1658 = vunpack.c.l.b16 %v927
    %v1659 = vunpack.c.h.b16 %v927
    %v1660 = vunpack.c.l.b16 %v928
    %v1661 = vunpack.c.h.b16 %v928
    %v1662 = vunpack.c.l.b16 %v929
    %v1663 = vunpack.c.h.b16 %v929
    %v1664 = vunpack.c.l.b16 %v930
    %v1665 = vunpack.c.h.b16 %v930
    %v1666 = vunpack.c.l.b16 %v931
    %v1667 = vunpack.c.h.b16 %v931
    %v1668 = vunpack.c.l.b16 %v932
    %v1669 = vunpack.c.h.b16 %v932
    %v1670 = vunpack.c.l.b16 %v933
    %v1671 = vunpack.c.h.b16 %v933
    %v1672 = vunpack.c.l.b16 %v934
    %v1673 = vunpack.c.h.b16 %v934
    %v1674 = vunpack.c.l.b16 %v935
    %v1675 = vunpack.c.h.b16 %v935
    %v1676 = vunpack.c.l.b16 %v936
    %v1677 = vunpack.c.h.b16 %v936
    %v1678 = vunpack.c.l.b16 %v937
    %v1679 = vunpack.c.h.b16 %v937
    %v1680 = vunpack.c.l.b16 %v938
    %v1681 = vunpack.c.h.b16 %v938
    %v1682 = vunpack.c.l.b16 %v939
    %v1683 = vunpack.c.h.b16 %v939
    %v1684 = vunpack.c.l.b16 %v940
    %v1685 = vunpack.c.h.b16 %v940
    %v1686 = vunpack.c.l.b16 %v941
    %v1687 = vunpack.c.h.b16 %v941
    %v1688 = vunpack.c.l.b16 %v942
    %v1689 = vunpack.c.h.b16 %v942
    %v1690 = vunpack.c.l.b16 %v943
    %v1691 = vunpack.c.h.b16 %v943
    %v1692 = vunpack.c.l.b16 %v944
    %v1693 = vunpack.c.h.b16 %v944
    %v1694 = vunpack.c.l.b16 %v945
    %v1695 = vunpack.c.h.b16 %v945
    %v1696 = vunpack.c.l.b16 %v946
    %v1697 = vunpack.c.h.b16 %v946
    %v1698 = vunpack.c.l.b16 %v947
    %v1699 = vunpack.c.h.b16 %v947
    %v1700 = vunpack.c.l.b16 %v948
    %v1701 = vunpack.c.h.b16 %v948
    %v1702 = vunpack.c.l.b16 %v949
    %v1703 = vunpack.c.h.b16 %v949
    %v1704 = vunpack.c.l.b16 %v950
    %v1705 = vunpack.c.h.b16 %v950
    %v1706 = vunpack.c.l.b16 %v951
    %v1707 = vunpack.c.h.b16 %v951
    %v1708 = vunpack.c.l.b16 %v952
    %v1709 = vunpack.c.h.b16 %v952
    %v1710 = vunpack.c.l.b16 %v953
    %v1711 = vunpack.c.h.b16 %v953
    %v1712 = vunpack.c.l.b16 %v954
    %v1713 = vunpack.c.h.b16 %v954
    %v1714 = vunpack.c.l.b16 %v955
    %v1715 = vunpack.c.h.b16 %v955
    %v1716 = vunpack.c.l.b16 %v956
    %v1717 = vunpack.c.h.b16 %v956
    %v1718 = vunpack.c.l.b16 %v957
    %v1719 = vunpack.c.h.b16 %v957
    %v1720 = vunpack.c.l.b16 %v958
    %v1721 = vunpack.c.h.b16 %v958
    %v1722 = vunpack.c.l.b16 %v959
    %v1723 = vunpack.c.h.b16 %v959
    %v1724 = vunpack.c.l.b16 %v960
    %v1725 = vunpack.c.h.b16 %v960
    %v1726 = vunpack.c.l.b16 %v961
    %v1727 = vunpack.c.h.b16 %v961
    %v1728 = vunpack.c.l.b16 %v962
    %v1729 = vunpack.c.h.b16 %v962
    %v1730 = vunpack.c.l.b16 %v963
    %v1731 = vunpack.c.h.b16 %v963
    %v1732 = vunpack.c.l.b16 %v964
    %v1733 = vunpack.c.h.b16 %v964
    %v1734 = vunpack.c.l.b16 %v965
    %v1735 = vunpack.c.h.b16 %v965
    %v1736 = vunpack.c.l.b16 %v966
    %v1737 = vunpack.c.h.b16 %v966
    %v1738 = vunpack.c.l.b16 %v967
    %v1739 = vunpack.c.h.b16 %v967
    %v1740 = vunpack.c.l.b16 %v968
    %v1741 = vunpack.c.h.b16 %v968
    %v1742 = vunpack.c.l.b16 %v969
    %v1743 = vunpack.c.h.b16 %v969
    %v1744 = vunpack.c.l.b16 %v970
    %v1745 = vunpack.c.h.b16 %v970
    %v1746 = vunpack.c.l.b16 %v971
    %v1747 = vunpack.c.h.b16 %v971
    %v1748 = vunpack.c.l.b16 %v972
    %v1749 = vunpack.c.h.b16 %v972
    %v1750 = vunpack.c.l.b16 %v973
    %v1751 = vunpack.c.h.b16 %v973
    %v1752 = vunpack.c.l.b16 %v974
    %v1753 = vunpack.c.h.b16 %v974
    %v1754 = vunpack.c.l.b16 %v975
    %v1755 = vunpack.c.h.b16 %v975
    %v1756 = vunpack.c.l.b16 %v976
    %v1757 = vunpack.c.h.b16 %v976
    %v1758 = vunpack.c.l.b16 %v977
    %v1759 = vunpack.c.h.b16 %v977
    %v1760 = vunpack.c.l.b16 %v978
    %v1761 = vunpack.c.h.b16 %v978
    %v1762 = vunpack.c.l.b16 %v979
    %v1763 = vunpack.c.h.b16 %v979
    %v1764 = vunpack.c.l.b16 %v980
    %v1765 = vunpack.c.h.b16 %v980
    %v1766 = vunpack.c.l.b16 %v981
    %v1767 = vunpack.c.h.b16 %v981
    %v1768 = vunpack.c.l.b16 %v982
    %v1769 = vunpack.c.h.b16 %v982
    %v1770 = vunpack.c.l.b16 %v983
    %v1771 = vunpack.c.h.b16 %v983
    %v1772 = vunpack.c.l.b16 %v984
    %v1773 = vunpack.c.h.b16 %v984
    %v1774 = vunpack.c.l.b16 %v985
    %v1775 = vunpack.c.h.b16 %v985
    %v1776 = vunpack.c.l.b16 %v986
    %v1777 = vunpack.c.h.b16 %v986
    %v1778 = vunpack.c.l.b16 %v987
    %v1779 = vunpack.c.h.b16 %v987
    %v1780 = vunpack.c.l.b16 %v988
    %v1781 = vunpack.c.h.b16 %v988
    %v1782 = vunpack.c.l.b16 %v989
    %v1783 = vunpack.c.h.b16 %v989
    %v1784 = vunpack.c.l.b16 %v990
    %v1785 = vunpack.c.h.b16 %v990
    %v1786 = vunpack.c.l.b16 %v991
    %v1787 = vunpack.c.h.b16 %v991
    %v1788 = vunpack.c.l.b16 %v992
    %v1789 = vunpack.c.h.b16 %v992
    %v1790 = vunpack.c.l.b16 %v993
    %v1791 = vunpack.c.h.b16 %v993
    %v1792 = vunpack.c.l.b16 %v994
    %v1793 = vunpack.c.h.b16 %v994
    %v1794 = vunpack.c.l.b16 %v995
    %v1795 = vunpack.c.h.b16 %v995
    %v1796 = vunpack.c.l.b16 %v996
    %v1797 = vunpack.c.h.b16 %v996
    %v1798 = vunpack.c.l.b16 %v997
    %v1799 = vunpack.c.h.b16 %v997
    %v1800 = vunpack.c.l.b16 %v998
    %v1801 = vunpack.c.h.b16 %v998
    %v1802 = vunpack.c.l.b16 %v999
    %v1803 = vunpack.c.h.b16 %v999
    %v1804 = vunpack.c.l.b16 %v1000
    %v1805 = vunpack.c.h.b16 %v1000
    %v1806 = vunpack.c.l.b16 %v1001
    %v1807 = vunpack.c.h.b16 %v1001
    %v1808 = vunpack.c.l.b16 %v1002
    %v1809 = vunpack.c.h.b16 %v1002
    %v1810 = vunpack.c.l.b16 %v1003
    %v1811 = vunpack.c.h.b16 %v1003
    %v1812 = vunpack.c.l.b16 %v1004
    %v1813 = vunpack.c.h.b16 %v1004
    %v1814 = vunpack.c.l.b16 %v1005
    %v1815 = vunpack.c.h.b16 %v1005
    %v1816 = vpack.c.b16 %v1312, %v1304
    %v1817 = vpack.c.b16 %v1313, %v1305
    %v1818 = vpack.c.b16 %v1314, %v1306
    %v1819 = vpack.c.b16 %v1315, %v1307
    %v1820 = vpack.c.b16 %v1316, %v1308
    %v1821 = vpack.c.b16 %v1317, %v1309
    %v1822 = vpack.c.b16 %v1318, %v1310
    %v1823 = vpack.c.b16 %v1319, %v1311
    %v1824 = vpack.c.b16 %v1328, %v1320
    %v1825 = vpack.c.b16 %v1329, %v1321
    %v1826 = vpack.c.b16 %v1330, %v1322
    %v1827 = vpack.c.b16 %v1331, %v1323
    %v1828 = vpack.c.b16 %v1332, %v1324
    %v1829 = vpack.c.b16 %v1333, %v1325
    %v1830 = vpack.c.b16 %v1334, %v1326
    %v1831 = vpack.c.b16 %v1335, %v1327
    %v1832 = vpack.c.b16 %v1344, %v1336
    %v1833 = vpack.c.b16 %v1345, %v1337
    %v1834 = vpack.c.b16 %v1346, %v1338
    %v1835 = vpack.c.b16 %v1347, %v1339
    %v1836 = vpack.c.b16 %v1348, %v1340
    %v1837 = vpack.c.b16 %v1349, %v1341
    %v1838 = vpack.c.b16 %v1350, %v1342
    %v1839 = vpack.c.b16 %v1351, %v1343
    %v1840 = vpack.c.b16 %v1360, %v1352
    %v1841 = vpack.c.b16 %v1361, %v1353
    %v1842 = vpack.c.b16 %v1362, %v1354
    %v1843 = vpack.c.b16 %v1363, %v1355
    %v1844 = vpack.c.b16 %v1364, %v1356
    %v1845 = vpack.c.b16 %v1365, %v1357
    %v1846 = vpack.c.b16 %v1366, %v1358
    %v1847 = vpack.c.b16 %v1367, %v1359
    %v1848 = vpack.c.b16 %v1376, %v1368
    %v1849 = vpack.c.b16 %v1377, %v1369
    %v1850 = vpack.c.b16 %v1378, %v1370
    %v1851 = vpack.c.b16 %v1379, %v1371
    %v1852 = vpack.c.b16 %v1380, %v1372
    %v1853 = vpack.c.b16 %v1381, %v1373
    %v1854 = vpack.c.b16 %v1382, %v1374
    %v1855 = vpack.c.b16 %v1383, %v1375
    %v1856 = vpack.c.b16 %v1392, %v1384
    %v1857 = vpack.c.b16 %v1393, %v1385
    %v1858 = vpack.c.b16 %v1394, %v1386
    %v1859 = vpack.c.b16 %v1395, %v1387
    %v1860 = vpack.c.b16 %v1396, %v1388
    %v1861 = vpack.c.b16 %v1397, %v1389
    %v1862 = vpack.c.b16 %v1398, %v1390
    %v1863 = vpack.c.b16 %v1399, %v1391
    %v1864 = vpack.c.b16 %v1408, %v1400
    %v1865 = vpack.c.b16 %v1409, %v1401
    %v1866 = vpack.c.b16 %v1410, %v1402
    %v1867 = vpack.c.b16 %v1411, %v1403
    %v1868 = vpack.c.b16 %v1412, %v1404
    %v1869 = vpack.c.b16 %v1413, %v1405
    %v1870 = vpack.c.b16 %v1414, %v1406
    %v1871 = vpack.c.b16 %v1415, %v1407
    %v1872 = vpack.c.b16 %v1424, %v1416
    %v1873 = vpack.c.b16 %v1425, %v1417
    %v1874 = vpack.c.b16 %v1426, %v1418
    %v1875 = vpack.c.b16 %v1427, %v1419
    %v1876 = vpack.c.b16 %v1428, %v1420
    %v1877 = vpack.c.b16 %v1429, %v1421
    %v1878 = vpack.c.b16 %v1430, %v1422
    %v1879 = vpack.c.b16 %v1431, %v1423
    %v1880 = vpack.c.b16 %v1440, %v1432
    %v1881 = vpack.c.b16 %v1441, %v1433
    %v1882 = vpack.c.b16 %v1442, %v1434
    %v1883 = vpack.c.b16 %v1443, %v1435
    %v1884 = vpack.c.b16 %v1444, %v1436
    %v1885 = vpack.c.b16 %v1445, %v1437
    %v1886 = vpack.c.b16 %v1446, %v1438
    %v1887 = vpack.c.b16 %v1447, %v1439
    %v1888 = vpack.c.b16 %v1456, %v1448
    %v1889 = vpack.c.b16 %v1457, %v1449
    %v1890 = vpack.c.b16 %v1458, %v1450
    %v1891 = vpack.c.b16 %v1459, %v1451
    %v1892 = vpack.c.b16 %v1460, %v1452
    %v1893 = vpack.c.b16 %v1461, %v1453
    %v1894 = vpack.c.b16 %v1462, %v1454
    %v1895 = vpack.c.b16 %v1463, %v1455
    %v1896 = vpack.c.b16 %v1472, %v1464
    %v1897 = vpack.c.b16 %v1473, %v1465
    %v1898 = vpack.c.b16 %v1474, %v1466
    %v1899 = vpack.c.b16 %v1475, %v1467
    %v1900 = vpack.c.b16 %v1476, %v1468
    %v1901 = vpack.c.b16 %v1477, %v1469
    %v1902 = vpack.c.b16 %v1478, %v1470
    %v1903 = vpack.c.b16 %v1479, %v1471
    %v1904 = vpack.c.b16 %v1488, %v1480
    %v1905 = vpack.c.b16 %v1489, %v1481
    %v1906 = vpack.c.b16 %v1490, %v1482
    %v1907 = vpack.c.b16 %v1491, %v1483
    %v1908 = vpack.c.b16 %v1492, %v1484
    %v1909 = vpack.c.b16 %v1493, %v1485
    %v1910 = vpack.c.b16 %v1494, %v1486
    %v1911 = vpack.c.b16 %v1495, %v1487
    %v1912 = vpack.c.b16 %v1504, %v1496
    %v1913 = vpack.c.b16 %v1505, %v1497
    %v1914 = vpack.c.b16 %v1506, %v1498
    %v1915 = vpack.c.b16 %v1507, %v1499
    %v1916 = vpack.c.b16 %v1508, %v1500
    %v1917 = vpack.c.b16 %v1509, %v1501
    %v1918 = vpack.c.b16 %v1510, %v1502
    %v1919 = vpack.c.b16 %v1511, %v1503
    %v1920 = vpack.c.b16 %v1520, %v1512
    %v1921 = vpack.c.b16 %v1521, %v1513
    %v1922 = vpack.c.b16 %v1522, %v1514
    %v1923 = vpack.c.b16 %v1523, %v1515
    %v1924 = vpack.c.b16 %v1524, %v1516
    %v1925 = vpack.c.b16 %v1525, %v1517
    %v1926 = vpack.c.b16 %v1526, %v1518
    %v1927 = vpack.c.b16 %v1527, %v1519
    %v1928 = vpack.c.b16 %v1536, %v1528
    %v1929 = vpack.c.b16 %v1537, %v1529
    %v1930 = vpack.c.b16 %v1538, %v1530
    %v1931 = vpack.c.b16 %v1539, %v1531
    %v1932 = vpack.c.b16 %v1540, %v1532
    %v1933 = vpack.c.b16 %v1541, %v1533
    %v1934 = vpack.c.b16 %v1542, %v1534
    %v1935 = vpack.c.b16 %v1543, %v1535
    %v1936 = vpack.c.b16 %v1552, %v1544
    %v1937 = vpack.c.b16 %v1553, %v1545
    %v1938 = vpack.c.b16 %v1554, %v1546
    %v1939 = vpack.c.b16 %v1555, %v1547
    %v1940 = vpack.c.b16 %v1556, %v1548
    %v1941 = vpack.c.b16 %v1557, %v1549
    %v1942 = vpack.c.b16 %v1558, %v1550
    %v1943 = vpack.c.b16 %v1559, %v1551
    %v1944 = vpack.c.b16 %v1568, %v1560
    %v1945 = vpack.c.b16 %v1569, %v1561
    %v1946 = vpack.c.b16 %v1570, %v1562
    %v1947 = vpack.c.b16 %v1571, %v1563
    %v1948 = vpack.c.b16 %v1572, %v1564
    %v1949 = vpack.c.b16 %v1573, %v1565
    %v1950 = vpack.c.b16 %v1574, %v1566
    %v1951 = vpack.c.b16 %v1575, %v1567
    %v1952 = vpack.c.b16 %v1584, %v1576
    %v1953 = vpack.c.b16 %v1585, %v1577
    %v1954 = vpack.c.b16 %v1586, %v1578
    %v1955 = vpack.c.b16 %v1587, %v1579
    %v1956 = vpack.c.b16 %v1588, %v1580
    %v1957 = vpack.c.b16 %v1589, %v1581
    %v1958 = vpack.c.b16 %v1590, %v1582
    %v1959 = vpack.c.b16 %v1591, %v1583
    %v1960 = vpack.c.b16 %v1600, %v1592
    %v1961 = vpack.c.b16 %v1601, %v1593
    %v1962 = vpack.c.b16 %v1602, %v1594
    %v1963 = vpack.c.b16 %v1603, %v1595
    %v1964 = vpack.c.b16 %v1604, %v1596
    %v1965 = vpack.c.b16 %v1605, %v1597
    %v1966 = vpack.c.b16 %v1606, %v1598
    %v1967 = vpack.c.b16 %v1607, %v1599
    %v1968 = vpack.c.b16 %v1616, %v1608
    %v1969 = vpack.c.b16 %v1617, %v1609
    %v1970 = vpack.c.b16 %v1618, %v1610
    %v1971 = vpack.c.b16 %v1619, %v1611
    %v1972 = vpack.c.b16 %v1620, %v1612
    %v1973 = vpack.c.b16 %v1621, %v1613
    %v1974 = vpack.c.b16 %v1622, %v1614
    %v1975 = vpack.c.b16 %v1623, %v1615
    %v1976 = vpack.c.b16 %v1632, %v1624
    %v1977 = vpack.c.b16 %v1633, %v1625
    %v1978 = vpack.c.b16 %v1634, %v1626
    %v1979 = vpack.c.b16 %v1635, %v1627
    %v1980 = vpack.c.b16 %v1636, %v1628
    %v1981 = vpack.c.b16 %v1637, %v1629
    %v1982 = vpack.c.b16 %v1638, %v1630
    %v1983 = vpack.c.b16 %v1639, %v1631
    %v1984 = vpack.c.b16 %v1648, %v1640
    %v1985 = vpack.c.b16 %v1649, %v1641
    %v1986 = vpack.c.b16 %v1650, %v1642
    %v1987 = vpack.c.b16 %v1651, %v1643
    %v1988 = vpack.c.b16 %v1652, %v1644
    %v1989 = vpack.c.b16 %v1653, %v1645
    %v1990 = vpack.c.b16 %v1654, %v1646
    %v1991 = vpack.c.b16 %v1655, %v1647
    %v1992 = vpack.c.b16 %v1664, %v1656
    %v1993 = vpack.c.b16 %v1665, %v1657
    %v1994 = vpack.c.b16 %v1666, %v1658
    %v1995 = vpack.c.b16 %v1667, %v1659
    %v1996 = vpack.c.b16 %v1668, %v1660
    %v1997 = vpack.c.b16 %v1669, %v1661
    %v1998 = vpack.c.b16 %v1670, %v1662
    %v1999 = vpack.c.b16 %v1671, %v1663
    %v2000 = vpack.c.b16 %v1680, %v1672
    %v2001 = vpack.c.b16 %v1681, %v1673
    %v2002 = vpack.c.b16 %v1682, %v1674
    %v2003 = vpack.c.b16 %v1683, %v1675
    %v2004 = vpack.c.b16 %v1684, %v1676
    %v2005 = vpack.c.b16 %v1685, %v1677
    %v2006 = vpack.c.b16 %v1686, %v1678
    %v2007 = vpack.c.b16 %v1687, %v1679
    %v2008 = vpack.c.b16 %v1696, %v1688
    %v2009 = vpack.c.b16 %v1697, %v1689
    %v2010 = vpack.c.b16 %v1698, %v1690
    %v2011 = vpack.c.b16 %v1699, %v1691
    %v2012 = vpack.c.b16 %v1700, %v1692
    %v2013 = vpack.c.b16 %v1701, %v1693
    %v2014 = vpack.c.b16 %v1702, %v1694
    %v2015 = vpack.c.b16 %v1703, %v1695
    %v2016 = vpack.c.b16 %v1712, %v1704
    %v2017 = vpack.c.b16 %v1713, %v1705
    %v2018 = vpack.c.b16 %v1714, %v1706
    %v2019 = vpack.c.b16 %v1715, %v1707
    %v2020 = vpack.c.b16 %v1716, %v1708
    %v2021 = vpack.c.b16 %v1717, %v1709
    %v2022 = vpack.c.b16 %v1718, %v1710
    %v2023 = vpack.c.b16 %v1719, %v1711
    %v2024 = vpack.c.b16 %v1728, %v1720
    %v2025 = vpack.c.b16 %v1729, %v1721
    %v2026 = vpack.c.b16 %v1730, %v1722
    %v2027 = vpack.c.b16 %v1731, %v1723
    %v2028 = vpack.c.b16 %v1732, %v1724
    %v2029 = vpack.c.b16 %v1733, %v1725
    %v2030 = vpack.c.b16 %v1734, %v1726
    %v2031 = vpack.c.b16 %v1735, %v1727
    %v2032 = vpack.c.b16 %v1744, %v1736
    %v2033 = vpack.c.b16 %v1745, %v1737
    %v2034 = vpack.c.b16 %v1746, %v1738
    %v2035 = vpack.c.b16 %v1747, %v1739
    %v2036 = vpack.c.b16 %v1748, %v1740
    %v2037 = vpack.c.b16 %v1749, %v1741
    %v2038 = vpack.c.b16 %v1750, %v1742
    %v2039 = vpack.c.b16 %v1751, %v1743
    %v2040 = vpack.c.b16 %v1760, %v1752
    %v2041 = vpack.c.b16 %v1761, %v1753
    %v2042 = vpack.c.b16 %v1762, %v1754
    %v2043 = vpack.c.b16 %v1763, %v1755
    %v2044 = vpack.c.b16 %v1764, %v1756
    %v2045 = vpack.c.b16 %v1765, %v1757
    %v2046 = vpack.c.b16 %v1766, %v1758
    %v2047 = vpack.c.b16 %v1767, %v1759
    %v2048 = vpack.c.b16 %v1776, %v1768
    %v2049 = vpack.c.b16 %v1777, %v1769
    %v2050 = vpack.c.b16 %v1778, %v1770
    %v2051 = vpack.c.b16 %v1779, %v1771
    %v2052 = vpack.c.b16 %v1780, %v1772
    %v2053 = vpack.c.b16 %v1781, %v1773
    %v2054 = vpack.c.b16 %v1782, %v1774
    %v2055 = vpack.c.b16 %v1783, %v1775
    %v2056 = vpack.c.b16 %v1792, %v1784
    %v2057 = vpack.c.b16 %v1793, %v1785
    %v2058 = vpack.c.b16 %v1794, %v1786
    %v2059 = vpack.c.b16 %v1795, %v1787
    %v2060 = vpack.c.b16 %v1796, %v1788
    %v2061 = vpack.c.b16 %v1797, %v1789
    %v2062 = vpack.c.b16 %v1798, %v1790
    %v2063 = vpack.c.b16 %v1799, %v1791
    %v2064 = vpack.c.b16 %v1808, %v1800
    %v2065 = vpack.c.b16 %v1809, %v1801
    %v2066 = vpack.c.b16 %v1810, %v1802
    %v2067 = vpack.c.b16 %v1811, %v1803
    %v2068 = vpack.c.b16 %v1812, %v1804
    %v2069 = vpack.c.b16 %v1813, %v1805
    %v2070 = vpack.c.b16 %v1814, %v1806
    %v2071 = vpack.c.b16 %v1815, %v1807
    %2328 = vmatprep.subr.bf16.mxu0 %v1873
    %2329 = vmatpush1.bf16.msra.mxu0 %v1872
    %2330 = vmatprep.subr.bf16.mxu0 %v1865
    %2331 = vmatpush1.bf16.msra.mxu0 %v1864
    %2332 = vmatprep.subr.bf16.mxu0 %v1857
    %2333 = vmatpush1.bf16.msra.mxu0 %v1856
    %2334 = vmatprep.subr.bf16.mxu0 %v1849
    %2335 = vmatpush1.bf16.msra.mxu0 %v1848
    %2336 = vmatprep.subr.bf16.mxu0 %v1841
    %2337 = vmatpush1.bf16.msra.mxu0 %v1840
    %2338 = vmatprep.subr.bf16.mxu0 %v1833
    %2339 = vmatpush1.bf16.msra.mxu0 %v1832
    %2340 = vmatprep.subr.bf16.mxu0 %v1825
    %2341 = vmatpush1.bf16.msra.mxu0 %v1824
    %2342 = vmatprep.subr.bf16.mxu0 %v1817
    %2343 = vmatpush1.bf16.msra.mxu0 %v1816
    %2344 = vmatprep.subr.bf16.mxu0 %v1937
    %2345 = vmatpush2.bf16.msra.mxu0 %v1936
    %2346 = vmatprep.subr.bf16.mxu0 %v1929
    %2347 = vmatpush2.bf16.msra.mxu0 %v1928
    %2348 = vmatprep.subr.bf16.mxu0 %v1921
    %2349 = vmatpush2.bf16.msra.mxu0 %v1920
    %2350 = vmatprep.subr.bf16.mxu0 %v1913
    %2351 = vmatpush2.bf16.msra.mxu0 %v1912
    %2352 = vmatprep.subr.bf16.mxu0 %v1905
    %2353 = vmatpush2.bf16.msra.mxu0 %v1904
    %2354 = vmatprep.subr.bf16.mxu0 %v1897
    %2355 = vmatpush2.bf16.msra.mxu0 %v1896
    %2356 = vmatprep.subr.bf16.mxu0 %v1889
    %2357 = vmatpush2.bf16.msra.mxu0 %v1888
    %2358 = vmatprep.subr.bf16.mxu0 %v1881
    %2359 = vmatpush2.bf16.msra.mxu0 %v1880
    %2360 = vmatprep.mubr.bf16.mxu0 %v747
    %2361 = vmatmul.mubr.bf16.gmra.mxu0 %v746
    %v2362 = vpop.f32.mrf.mxu0
    %v2363 = vadd.f32 %v1011, %v2362
    %v2364 = vpop.f32.mrf.mxu0
    %v2365 = vadd.f32 %v1015, %v2364
    %v2366 = vpop.f32.mrf.mxu0
    %v2367 = vadd.f32 %v1011, %v2366
    %v2368 = vpop.f32.mrf.mxu0
    %v2369 = vadd.f32 %v1015, %v2368
    %2370 = vdwg.mxu0
    %2371 = vmatprep.subr.bf16.mxu0 %v2001
    %2372 = vmatpush1.bf16.msra.mxu0 %v2000
    %2373 = vmatprep.subr.bf16.mxu0 %v1993
    %2374 = vmatpush1.bf16.msra.mxu0 %v1992
    %2375 = vmatprep.subr.bf16.mxu0 %v1985
    %2376 = vmatpush1.bf16.msra.mxu0 %v1984
    %2377 = vmatprep.subr.bf16.mxu0 %v1977
    %2378 = vmatpush1.bf16.msra.mxu0 %v1976
    %2379 = vmatprep.subr.bf16.mxu0 %v1969
    %2380 = vmatpush1.bf16.msra.mxu0 %v1968
    %2381 = vmatprep.subr.bf16.mxu0 %v1961
    %2382 = vmatpush1.bf16.msra.mxu0 %v1960
    %2383 = vmatprep.subr.bf16.mxu0 %v1953
    %2384 = vmatpush1.bf16.msra.mxu0 %v1952
    %2385 = vmatprep.subr.bf16.mxu0 %v1945
    %2386 = vmatpush1.bf16.msra.mxu0 %v1944
    %2387 = vmatprep.subr.bf16.mxu0 %v2065
    %2388 = vmatpush2.bf16.msra.mxu0 %v2064
    %2389 = vmatprep.subr.bf16.mxu0 %v2057
    %2390 = vmatpush2.bf16.msra.mxu0 %v2056
    %2391 = vmatprep.subr.bf16.mxu0 %v2049
    %2392 = vmatpush2.bf16.msra.mxu0 %v2048
    %2393 = vmatprep.subr.bf16.mxu0 %v2041
    %2394 = vmatpush2.bf16.msra.mxu0 %v2040
    %2395 = vmatprep.subr.bf16.mxu0 %v2033
    %2396 = vmatpush2.bf16.msra.mxu0 %v2032
    %2397 = vmatprep.subr.bf16.mxu0 %v2025
    %2398 = vmatpush2.bf16.msra.mxu0 %v2024
    %2399 = vmatprep.subr.bf16.mxu0 %v2017
    %2400 = vmatpush2.bf16.msra.mxu0 %v2016
    %2401 = vmatprep.subr.bf16.mxu0 %v2009
    %2402 = vmatpush2.bf16.msra.mxu0 %v2008
    %2403 = vmatprep.mubr.bf16.mxu0 %v749
    %2404 = vmatmul.mubr.bf16.gmra.mxu0 %v748
    %v2405 = vpop.f32.mrf.mxu0
    %v2406 = vadd.f32 %v2363, %v2405
    %v2407 = vpop.f32.mrf.mxu0
    %v2408 = vadd.f32 %v2365, %v2407
    %v2409 = vpop.f32.mrf.mxu0
    %v2410 = vadd.f32 %v2367, %v2409
    %v2411 = vpop.f32.mrf.mxu0
    %v2412 = vadd.f32 %v2369, %v2411
    %2413 = vdwg.mxu0
    %2414 = vmatprep.subr.bf16.mxu0 %v1875
    %2415 = vmatpush1.bf16.msra.mxu0 %v1874
    %2416 = vmatprep.subr.bf16.mxu0 %v1867
    %2417 = vmatpush1.bf16.msra.mxu0 %v1866
    %2418 = vmatprep.subr.bf16.mxu0 %v1859
    %2419 = vmatpush1.bf16.msra.mxu0 %v1858
    %2420 = vmatprep.subr.bf16.mxu0 %v1851
    %2421 = vmatpush1.bf16.msra.mxu0 %v1850
    %2422 = vmatprep.subr.bf16.mxu0 %v1843
    %2423 = vmatpush1.bf16.msra.mxu0 %v1842
    %2424 = vmatprep.subr.bf16.mxu0 %v1835
    %2425 = vmatpush1.bf16.msra.mxu0 %v1834
    %2426 = vmatprep.subr.bf16.mxu0 %v1827
    %2427 = vmatpush1.bf16.msra.mxu0 %v1826
    %2428 = vmatprep.subr.bf16.mxu0 %v1819
    %2429 = vmatpush1.bf16.msra.mxu0 %v1818
    %2430 = vmatprep.subr.bf16.mxu0 %v1939
    %2431 = vmatpush2.bf16.msra.mxu0 %v1938
    %2432 = vmatprep.subr.bf16.mxu0 %v1931
    %2433 = vmatpush2.bf16.msra.mxu0 %v1930
    %2434 = vmatprep.subr.bf16.mxu0 %v1923
    %2435 = vmatpush2.bf16.msra.mxu0 %v1922
    %2436 = vmatprep.subr.bf16.mxu0 %v1915
    %2437 = vmatpush2.bf16.msra.mxu0 %v1914
    %2438 = vmatprep.subr.bf16.mxu0 %v1907
    %2439 = vmatpush2.bf16.msra.mxu0 %v1906
    %2440 = vmatprep.subr.bf16.mxu0 %v1899
    %2441 = vmatpush2.bf16.msra.mxu0 %v1898
    %2442 = vmatprep.subr.bf16.mxu0 %v1891
    %2443 = vmatpush2.bf16.msra.mxu0 %v1890
    %2444 = vmatprep.subr.bf16.mxu0 %v1883
    %2445 = vmatpush2.bf16.msra.mxu0 %v1882
    %2446 = vmatprep.mubr.bf16.mxu0 %v747
    %2447 = vmatmul.mubr.bf16.gmra.mxu0 %v746
    %v2448 = vpop.f32.mrf.mxu0
    %v2449 = vadd.f32 %v1019, %v2448
    %v2450 = vpop.f32.mrf.mxu0
    %v2451 = vadd.f32 %v1023, %v2450
    %v2452 = vpop.f32.mrf.mxu0
    %v2453 = vadd.f32 %v1019, %v2452
    %v2454 = vpop.f32.mrf.mxu0
    %v2455 = vadd.f32 %v1023, %v2454
    %2456 = vdwg.mxu0
    %2457 = vmatprep.subr.bf16.mxu0 %v2003
    %2458 = vmatpush1.bf16.msra.mxu0 %v2002
    %2459 = vmatprep.subr.bf16.mxu0 %v1995
    %2460 = vmatpush1.bf16.msra.mxu0 %v1994
    %2461 = vmatprep.subr.bf16.mxu0 %v1987
    %2462 = vmatpush1.bf16.msra.mxu0 %v1986
    %2463 = vmatprep.subr.bf16.mxu0 %v1979
    %2464 = vmatpush1.bf16.msra.mxu0 %v1978
    %2465 = vmatprep.subr.bf16.mxu0 %v1971
    %2466 = vmatpush1.bf16.msra.mxu0 %v1970
    %2467 = vmatprep.subr.bf16.mxu0 %v1963
    %2468 = vmatpush1.bf16.msra.mxu0 %v1962
    %2469 = vmatprep.subr.bf16.mxu0 %v1955
    %2470 = vmatpush1.bf16.msra.mxu0 %v1954
    %2471 = vmatprep.subr.bf16.mxu0 %v1947
    %2472 = vmatpush1.bf16.msra.mxu0 %v1946
    %2473 = vmatprep.subr.bf16.mxu0 %v2067
    %2474 = vmatpush2.bf16.msra.mxu0 %v2066
    %2475 = vmatprep.subr.bf16.mxu0 %v2059
    %2476 = vmatpush2.bf16.msra.mxu0 %v2058
    %2477 = vmatprep.subr.bf16.mxu0 %v2051
    %2478 = vmatpush2.bf16.msra.mxu0 %v2050
    %2479 = vmatprep.subr.bf16.mxu0 %v2043
    %2480 = vmatpush2.bf16.msra.mxu0 %v2042
    %2481 = vmatprep.subr.bf16.mxu0 %v2035
    %2482 = vmatpush2.bf16.msra.mxu0 %v2034
    %2483 = vmatprep.subr.bf16.mxu0 %v2027
    %2484 = vmatpush2.bf16.msra.mxu0 %v2026
    %2485 = vmatprep.subr.bf16.mxu0 %v2019
    %2486 = vmatpush2.bf16.msra.mxu0 %v2018
    %2487 = vmatprep.subr.bf16.mxu0 %v2011
    %2488 = vmatpush2.bf16.msra.mxu0 %v2010
    %2489 = vmatprep.mubr.bf16.mxu0 %v749
    %2490 = vmatmul.mubr.bf16.gmra.mxu0 %v748
    %v2491 = vpop.f32.mrf.mxu0
    %v2492 = vadd.f32 %v2449, %v2491
    %v2493 = vpop.f32.mrf.mxu0
    %v2494 = vadd.f32 %v2451, %v2493
    %v2495 = vpop.f32.mrf.mxu0
    %v2496 = vadd.f32 %v2453, %v2495
    %v2497 = vpop.f32.mrf.mxu0
    %v2498 = vadd.f32 %v2455, %v2497
    %2499 = vdwg.mxu0
    %2500 = vmatprep.subr.bf16.mxu0 %v1877
    %2501 = vmatpush1.bf16.msra.mxu0 %v1876
    %2502 = vmatprep.subr.bf16.mxu0 %v1869
    %2503 = vmatpush1.bf16.msra.mxu0 %v1868
    %2504 = vmatprep.subr.bf16.mxu0 %v1861
    %2505 = vmatpush1.bf16.msra.mxu0 %v1860
    %2506 = vmatprep.subr.bf16.mxu0 %v1853
    %2507 = vmatpush1.bf16.msra.mxu0 %v1852
    %2508 = vmatprep.subr.bf16.mxu0 %v1845
    %2509 = vmatpush1.bf16.msra.mxu0 %v1844
    %2510 = vmatprep.subr.bf16.mxu0 %v1837
    %2511 = vmatpush1.bf16.msra.mxu0 %v1836
    %2512 = vmatprep.subr.bf16.mxu0 %v1829
    %2513 = vmatpush1.bf16.msra.mxu0 %v1828
    %2514 = vmatprep.subr.bf16.mxu0 %v1821
    %2515 = vmatpush1.bf16.msra.mxu0 %v1820
    %2516 = vmatprep.subr.bf16.mxu0 %v1941
    %2517 = vmatpush2.bf16.msra.mxu0 %v1940
    %2518 = vmatprep.subr.bf16.mxu0 %v1933
    %2519 = vmatpush2.bf16.msra.mxu0 %v1932
    %2520 = vmatprep.subr.bf16.mxu0 %v1925
    %2521 = vmatpush2.bf16.msra.mxu0 %v1924
    %2522 = vmatprep.subr.bf16.mxu0 %v1917
    %2523 = vmatpush2.bf16.msra.mxu0 %v1916
    %2524 = vmatprep.subr.bf16.mxu0 %v1909
    %2525 = vmatpush2.bf16.msra.mxu0 %v1908
    %2526 = vmatprep.subr.bf16.mxu0 %v1901
    %2527 = vmatpush2.bf16.msra.mxu0 %v1900
    %2528 = vmatprep.subr.bf16.mxu0 %v1893
    %2529 = vmatpush2.bf16.msra.mxu0 %v1892
    %2530 = vmatprep.subr.bf16.mxu0 %v1885
    %2531 = vmatpush2.bf16.msra.mxu0 %v1884
    %2532 = vmatprep.mubr.bf16.mxu0 %v747
    %2533 = vmatmul.mubr.bf16.gmra.mxu0 %v746
    %v2534 = vpop.f32.mrf.mxu0
    %v2535 = vadd.f32 %v1027, %v2534
    %v2536 = vpop.f32.mrf.mxu0
    %v2537 = vadd.f32 %v1031, %v2536
    %v2538 = vpop.f32.mrf.mxu0
    %v2539 = vadd.f32 %v1027, %v2538
    %v2540 = vpop.f32.mrf.mxu0
    %v2541 = vadd.f32 %v1031, %v2540
    %2542 = vdwg.mxu0
    %2543 = vmatprep.subr.bf16.mxu0 %v2005
    %2544 = vmatpush1.bf16.msra.mxu0 %v2004
    %2545 = vmatprep.subr.bf16.mxu0 %v1997
    %2546 = vmatpush1.bf16.msra.mxu0 %v1996
    %2547 = vmatprep.subr.bf16.mxu0 %v1989
    %2548 = vmatpush1.bf16.msra.mxu0 %v1988
    %2549 = vmatprep.subr.bf16.mxu0 %v1981
    %2550 = vmatpush1.bf16.msra.mxu0 %v1980
    %2551 = vmatprep.subr.bf16.mxu0 %v1973
    %2552 = vmatpush1.bf16.msra.mxu0 %v1972
    %2553 = vmatprep.subr.bf16.mxu0 %v1965
    %2554 = vmatpush1.bf16.msra.mxu0 %v1964
    %2555 = vmatprep.subr.bf16.mxu0 %v1957
    %2556 = vmatpush1.bf16.msra.mxu0 %v1956
    %2557 = vmatprep.subr.bf16.mxu0 %v1949
    %2558 = vmatpush1.bf16.msra.mxu0 %v1948
    %2559 = vmatprep.subr.bf16.mxu0 %v2069
    %2560 = vmatpush2.bf16.msra.mxu0 %v2068
    %2561 = vmatprep.subr.bf16.mxu0 %v2061
    %2562 = vmatpush2.bf16.msra.mxu0 %v2060
    %2563 = vmatprep.subr.bf16.mxu0 %v2053
    %2564 = vmatpush2.bf16.msra.mxu0 %v2052
    %2565 = vmatprep.subr.bf16.mxu0 %v2045
    %2566 = vmatpush2.bf16.msra.mxu0 %v2044
    %2567 = vmatprep.subr.bf16.mxu0 %v2037
    %2568 = vmatpush2.bf16.msra.mxu0 %v2036
    %2569 = vmatprep.subr.bf16.mxu0 %v2029
    %2570 = vmatpush2.bf16.msra.mxu0 %v2028
    %2571 = vmatprep.subr.bf16.mxu0 %v2021
    %2572 = vmatpush2.bf16.msra.mxu0 %v2020
    %2573 = vmatprep.subr.bf16.mxu0 %v2013
    %2574 = vmatpush2.bf16.msra.mxu0 %v2012
    %2575 = vmatprep.mubr.bf16.mxu0 %v749
    %2576 = vmatmul.mubr.bf16.gmra.mxu0 %v748
    %v2577 = vpop.f32.mrf.mxu0
    %v2578 = vadd.f32 %v2535, %v2577
    %v2579 = vpop.f32.mrf.mxu0
    %v2580 = vadd.f32 %v2537, %v2579
    %v2581 = vpop.f32.mrf.mxu0
    %v2582 = vadd.f32 %v2539, %v2581
    %v2583 = vpop.f32.mrf.mxu0
    %v2584 = vadd.f32 %v2541, %v2583
    %2585 = vdwg.mxu0
    %2586 = vmatprep.subr.bf16.mxu0 %v1879
    %2587 = vmatpush1.bf16.msra.mxu0 %v1878
    %2588 = vmatprep.subr.bf16.mxu0 %v1871
    %2589 = vmatpush1.bf16.msra.mxu0 %v1870
    %2590 = vmatprep.subr.bf16.mxu0 %v1863
    %2591 = vmatpush1.bf16.msra.mxu0 %v1862
    %2592 = vmatprep.subr.bf16.mxu0 %v1855
    %2593 = vmatpush1.bf16.msra.mxu0 %v1854
    %2594 = vmatprep.subr.bf16.mxu0 %v1847
    %2595 = vmatpush1.bf16.msra.mxu0 %v1846
    %2596 = vmatprep.subr.bf16.mxu0 %v1839
    %2597 = vmatpush1.bf16.msra.mxu0 %v1838
    %2598 = vmatprep.subr.bf16.mxu0 %v1831
    %2599 = vmatpush1.bf16.msra.mxu0 %v1830
    %2600 = vmatprep.subr.bf16.mxu0 %v1823
    %2601 = vmatpush1.bf16.msra.mxu0 %v1822
    %2602 = vmatprep.subr.bf16.mxu0 %v1943
    %2603 = vmatpush2.bf16.msra.mxu0 %v1942
    %2604 = vmatprep.subr.bf16.mxu0 %v1935
    %2605 = vmatpush2.bf16.msra.mxu0 %v1934
    %2606 = vmatprep.subr.bf16.mxu0 %v1927
    %2607 = vmatpush2.bf16.msra.mxu0 %v1926
    %2608 = vmatprep.subr.bf16.mxu0 %v1919
    %2609 = vmatpush2.bf16.msra.mxu0 %v1918
    %2610 = vmatprep.subr.bf16.mxu0 %v1911
    %2611 = vmatpush2.bf16.msra.mxu0 %v1910
    %2612 = vmatprep.subr.bf16.mxu0 %v1903
    %2613 = vmatpush2.bf16.msra.mxu0 %v1902
    %2614 = vmatprep.subr.bf16.mxu0 %v1895
    %2615 = vmatpush2.bf16.msra.mxu0 %v1894
    %2616 = vmatprep.subr.bf16.mxu0 %v1887
    %2617 = vmatpush2.bf16.msra.mxu0 %v1886
    %2618 = vmatprep.mubr.bf16.mxu0 %v747
    %2619 = vmatmul.mubr.bf16.gmra.mxu0 %v746
    %v2620 = vpop.f32.mrf.mxu0
    %v2621 = vadd.f32 %v1035, %v2620
    %v2622 = vpop.f32.mrf.mxu0
    %v2623 = vadd.f32 %v1039, %v2622
    %v2624 = vpop.f32.mrf.mxu0
    %v2625 = vadd.f32 %v1035, %v2624
    %v2626 = vpop.f32.mrf.mxu0
    %v2627 = vadd.f32 %v1039, %v2626
    %2628 = vdwg.mxu0
    %2629 = vmatprep.subr.bf16.mxu0 %v2007
    %2630 = vmatpush1.bf16.msra.mxu0 %v2006
    %2631 = vmatprep.subr.bf16.mxu0 %v1999
    %2632 = vmatpush1.bf16.msra.mxu0 %v1998
    %2633 = vmatprep.subr.bf16.mxu0 %v1991
    %2634 = vmatpush1.bf16.msra.mxu0 %v1990
    %2635 = vmatprep.subr.bf16.mxu0 %v1983
    %2636 = vmatpush1.bf16.msra.mxu0 %v1982
    %2637 = vmatprep.subr.bf16.mxu0 %v1975
    %2638 = vmatpush1.bf16.msra.mxu0 %v1974
    %2639 = vmatprep.subr.bf16.mxu0 %v1967
    %2640 = vmatpush1.bf16.msra.mxu0 %v1966
    %2641 = vmatprep.subr.bf16.mxu0 %v1959
    %2642 = vmatpush1.bf16.msra.mxu0 %v1958
    %2643 = vmatprep.subr.bf16.mxu0 %v1951
    %2644 = vmatpush1.bf16.msra.mxu0 %v1950
    %2645 = vmatprep.subr.bf16.mxu0 %v2071
    %2646 = vmatpush2.bf16.msra.mxu0 %v2070
    %2647 = vmatprep.subr.bf16.mxu0 %v2063
    %2648 = vmatpush2.bf16.msra.mxu0 %v2062
    %2649 = vmatprep.subr.bf16.mxu0 %v2055
    %2650 = vmatpush2.bf16.msra.mxu0 %v2054
    %2651 = vmatprep.subr.bf16.mxu0 %v2047
    %2652 = vmatpush2.bf16.msra.mxu0 %v2046
    %2653 = vmatprep.subr.bf16.mxu0 %v2039
    %2654 = vmatpush2.bf16.msra.mxu0 %v2038
    %2655 = vmatprep.subr.bf16.mxu0 %v2031
    %2656 = vmatpush2.bf16.msra.mxu0 %v2030
    %2657 = vmatprep.subr.bf16.mxu0 %v2023
    %2658 = vmatpush2.bf16.msra.mxu0 %v2022
    %2659 = vmatprep.subr.bf16.mxu0 %v2015
    %2660 = vmatpush2.bf16.msra.mxu0 %v2014
    %2661 = vmatprep.mubr.bf16.mxu0 %v749
    %2662 = vmatmul.mubr.bf16.gmra.mxu0 %v748
    %v2663 = vpop.f32.mrf.mxu0
    %v2664 = vadd.f32 %v2621, %v2663
    %v2665 = vpop.f32.mrf.mxu0
    %v2666 = vadd.f32 %v2623, %v2665
    %v2667 = vpop.f32.mrf.mxu0
    %v2668 = vadd.f32 %v2625, %v2667
    %v2669 = vpop.f32.mrf.mxu0
    %v2670 = vadd.f32 %v2627, %v2669
    %2671 = vdwg.mxu0
    %v2672 = vmul.f32 %v2406, 0.01
    %v2673 = vmul.f32 %v2408, 0.01
    %v2674 = vmul.f32 %v2492, 0.01
    %v2675 = vmul.f32 %v2494, 0.01
    %v2676 = vmul.f32 %v2578, 0.01
    %v2677 = vmul.f32 %v2580, 0.01
    %v2678 = vmul.f32 %v2664, 0.01
    %v2679 = vmul.f32 %v2666, 0.01
    %v2680 = vmul.f32 %v2410, 0.01
    %v2681 = vmul.f32 %v2412, 0.01
    %v2682 = vmul.f32 %v2496, 0.01
    %v2683 = vmul.f32 %v2498, 0.01
    %v2684 = vmul.f32 %v2582, 0.01
    %v2685 = vmul.f32 %v2584, 0.01
    %v2686 = vmul.f32 %v2668, 0.01
    %v2687 = vmul.f32 %v2670, 0.01
    %v2688 = vmax.f32 %v2406, %v2672
    %v2689 = vmax.f32 %v2408, %v2673
    %v2690 = vmax.f32 %v2492, %v2674
    %v2691 = vmax.f32 %v2494, %v2675
    %v2692 = vmax.f32 %v2578, %v2676
    %v2693 = vmax.f32 %v2580, %v2677
    %v2694 = vmax.f32 %v2664, %v2678
    %v2695 = vmax.f32 %v2666, %v2679
    %v2696 = vmax.f32 %v2410, %v2680
    %v2697 = vmax.f32 %v2412, %v2681
    %v2698 = vmax.f32 %v2496, %v2682
    %v2699 = vmax.f32 %v2498, %v2683
    %v2700 = vmax.f32 %v2582, %v2684
    %v2701 = vmax.f32 %v2584, %v2685
    %v2702 = vmax.f32 %v2668, %v2686
    %v2703 = vmax.f32 %v2670, %v2687
    %v2704 = vpack.c.bf16 %v2696, %v2688
    %v2705 = vpack.c.bf16 %v2697, %v2689
    %v2706 = vpack.c.bf16 %v2698, %v2690
    %v2707 = vpack.c.bf16 %v2699, %v2691
    %v2708 = vpack.c.bf16 %v2700, %v2692
    %v2709 = vpack.c.bf16 %v2701, %v2693
    %v2710 = vpack.c.bf16 %v2702, %v2694
    %v2711 = vpack.c.bf16 %v2703, %v2695
    %v2712 = vld [vmem:[#allocation11] sm:$0xf]
    %v2713 = vld [vmem:[#allocation11 + $0x4] sm:$0xf]
    %v2714 = vld [vmem:[#allocation11 + $0x8] sm:$0xf]
    %v2715 = vld [vmem:[#allocation11 + $0xc] sm:$0xf]
    %v2716 = vld [vmem:[#allocation11 + $0x10] sm:$0xf]
    %v2717 = vld [vmem:[#allocation11 + $0x14] sm:$0xf]
    %v2718 = vld [vmem:[#allocation11 + $0x18] sm:$0xf]
    %v2719 = vld [vmem:[#allocation11 + $0x1c] sm:$0xf]
    %v2720 = vld [vmem:[#allocation11 + $0x20] sm:$0xf]
    %v2721 = vld [vmem:[#allocation11 + $0x24] sm:$0xf]
    %v2722 = vld [vmem:[#allocation11 + $0x28] sm:$0xf]
    %v2723 = vld [vmem:[#allocation11 + $0x2c] sm:$0xf]
    %v2724 = vld [vmem:[#allocation11 + $0x30] sm:$0xf]
    %v2725 = vld [vmem:[#allocation11 + $0x34] sm:$0xf]
    %v2726 = vld [vmem:[#allocation11 + $0x38] sm:$0xf]
    %v2727 = vld [vmem:[#allocation11 + $0x3c] sm:$0xf]
    %v2728 = vld [vmem:[#allocation11 + $0x40] sm:$0xf]
    %v2729 = vld [vmem:[#allocation11 + $0x44] sm:$0xf]
    %v2730 = vld [vmem:[#allocation11 + $0x48] sm:$0xf]
    %v2731 = vld [vmem:[#allocation11 + $0x4c] sm:$0xf]
    %v2732 = vld [vmem:[#allocation11 + $0x50] sm:$0xf]
    %v2733 = vld [vmem:[#allocation11 + $0x54] sm:$0xf]
    %v2734 = vld [vmem:[#allocation11 + $0x58] sm:$0xf]
    %v2735 = vld [vmem:[#allocation11 + $0x5c] sm:$0xf]
    %v2736 = vld [vmem:[#allocation11 + $0x60] sm:$0xf]
    %v2737 = vld [vmem:[#allocation11 + $0x64] sm:$0xf]
    %v2738 = vld [vmem:[#allocation11 + $0x68] sm:$0xf]
    %v2739 = vld [vmem:[#allocation11 + $0x6c] sm:$0xf]
    %v2740 = vld [vmem:[#allocation11 + $0x70] sm:$0xf]
    %v2741 = vld [vmem:[#allocation11 + $0x74] sm:$0xf]
    %v2742 = vld [vmem:[#allocation11 + $0x78] sm:$0xf]
    %v2743 = vld [vmem:[#allocation11 + $0x7c] sm:$0xf]
    %v2744 = vld [vmem:[#allocation11 + $0x80] sm:$0xf]
    %v2745 = vld [vmem:[#allocation11 + $0x84] sm:$0xf]
    %v2746 = vld [vmem:[#allocation11 + $0x88] sm:$0xf]
    %v2747 = vld [vmem:[#allocation11 + $0x8c] sm:$0xf]
    %v2748 = vld [vmem:[#allocation11 + $0x90] sm:$0xf]
    %v2749 = vld [vmem:[#allocation11 + $0x94] sm:$0xf]
    %v2750 = vld [vmem:[#allocation11 + $0x98] sm:$0xf]
    %v2751 = vld [vmem:[#allocation11 + $0x9c] sm:$0xf]
    %v2752 = vld [vmem:[#allocation11 + $0xa0] sm:$0xf]
    %v2753 = vld [vmem:[#allocation11 + $0xa4] sm:$0xf]
    %v2754 = vld [vmem:[#allocation11 + $0xa8] sm:$0xf]
    %v2755 = vld [vmem:[#allocation11 + $0xac] sm:$0xf]
    %v2756 = vld [vmem:[#allocation11 + $0xb0] sm:$0xf]
    %v2757 = vld [vmem:[#allocation11 + $0xb4] sm:$0xf]
    %v2758 = vld [vmem:[#allocation11 + $0xb8] sm:$0xf]
    %v2759 = vld [vmem:[#allocation11 + $0xbc] sm:$0xf]
    %v2760 = vld [vmem:[#allocation11 + $0xc0] sm:$0xf]
    %v2761 = vld [vmem:[#allocation11 + $0xc4] sm:$0xf]
    %v2762 = vld [vmem:[#allocation11 + $0xc8] sm:$0xf]
    %v2763 = vld [vmem:[#allocation11 + $0xcc] sm:$0xf]
    %v2764 = vld [vmem:[#allocation11 + $0xd0] sm:$0xf]
    %v2765 = vld [vmem:[#allocation11 + $0xd4] sm:$0xf]
    %v2766 = vld [vmem:[#allocation11 + $0xd8] sm:$0xf]
    %v2767 = vld [vmem:[#allocation11 + $0xdc] sm:$0xf]
    %v2768 = vld [vmem:[#allocation11 + $0xe0] sm:$0xf]
    %v2769 = vld [vmem:[#allocation11 + $0xe4] sm:$0xf]
    %v2770 = vld [vmem:[#allocation11 + $0xe8] sm:$0xf]
    %v2771 = vld [vmem:[#allocation11 + $0xec] sm:$0xf]
    %v2772 = vld [vmem:[#allocation11 + $0xf0] sm:$0xf]
    %v2773 = vld [vmem:[#allocation11 + $0xf4] sm:$0xf]
    %v2774 = vld [vmem:[#allocation11 + $0xf8] sm:$0xf]
    %v2775 = vld [vmem:[#allocation11 + $0xfc] sm:$0xf]
    %v2776 = vld [vmem:[#allocation11 + $0x100] sm:$0xf]
    %v2777 = vld [vmem:[#allocation11 + $0x104] sm:$0xf]
    %v2778 = vld [vmem:[#allocation11 + $0x108] sm:$0xf]
    %v2779 = vld [vmem:[#allocation11 + $0x10c] sm:$0xf]
    %v2780 = vld [vmem:[#allocation11 + $0x110] sm:$0xf]
    %v2781 = vld [vmem:[#allocation11 + $0x114] sm:$0xf]
    %v2782 = vld [vmem:[#allocation11 + $0x118] sm:$0xf]
    %v2783 = vld [vmem:[#allocation11 + $0x11c] sm:$0xf]
    %v2784 = vld [vmem:[#allocation11 + $0x120] sm:$0xf]
    %v2785 = vld [vmem:[#allocation11 + $0x124] sm:$0xf]
    %v2786 = vld [vmem:[#allocation11 + $0x128] sm:$0xf]
    %v2787 = vld [vmem:[#allocation11 + $0x12c] sm:$0xf]
    %v2788 = vld [vmem:[#allocation11 + $0x130] sm:$0xf]
    %v2789 = vld [vmem:[#allocation11 + $0x134] sm:$0xf]
    %v2790 = vld [vmem:[#allocation11 + $0x138] sm:$0xf]
    %v2791 = vld [vmem:[#allocation11 + $0x13c] sm:$0xf]
    %v2792 = vld [vmem:[#allocation11 + $0x140] sm:$0xf]
    %v2793 = vld [vmem:[#allocation11 + $0x144] sm:$0xf]
    %v2794 = vld [vmem:[#allocation11 + $0x148] sm:$0xf]
    %v2795 = vld [vmem:[#allocation11 + $0x14c] sm:$0xf]
    %v2796 = vld [vmem:[#allocation11 + $0x150] sm:$0xf]
    %v2797 = vld [vmem:[#allocation11 + $0x154] sm:$0xf]
    %v2798 = vld [vmem:[#allocation11 + $0x158] sm:$0xf]
    %v2799 = vld [vmem:[#allocation11 + $0x15c] sm:$0xf]
    %v2800 = vld [vmem:[#allocation11 + $0x160] sm:$0xf]
    %v2801 = vld [vmem:[#allocation11 + $0x164] sm:$0xf]
    %v2802 = vld [vmem:[#allocation11 + $0x168] sm:$0xf]
    %v2803 = vld [vmem:[#allocation11 + $0x16c] sm:$0xf]
    %v2804 = vld [vmem:[#allocation11 + $0x170] sm:$0xf]
    %v2805 = vld [vmem:[#allocation11 + $0x174] sm:$0xf]
    %v2806 = vld [vmem:[#allocation11 + $0x178] sm:$0xf]
    %v2807 = vld [vmem:[#allocation11 + $0x17c] sm:$0xf]
    %v2808 = vld [vmem:[#allocation11 + $0x180] sm:$0xf]
    %v2809 = vld [vmem:[#allocation11 + $0x184] sm:$0xf]
    %v2810 = vld [vmem:[#allocation11 + $0x188] sm:$0xf]
    %v2811 = vld [vmem:[#allocation11 + $0x18c] sm:$0xf]
    %v2812 = vld [vmem:[#allocation11 + $0x190] sm:$0xf]
    %v2813 = vld [vmem:[#allocation11 + $0x194] sm:$0xf]
    %v2814 = vld [vmem:[#allocation11 + $0x198] sm:$0xf]
    %v2815 = vld [vmem:[#allocation11 + $0x19c] sm:$0xf]
    %v2816 = vld [vmem:[#allocation11 + $0x1a0] sm:$0xf]
    %v2817 = vld [vmem:[#allocation11 + $0x1a4] sm:$0xf]
    %v2818 = vld [vmem:[#allocation11 + $0x1a8] sm:$0xf]
    %v2819 = vld [vmem:[#allocation11 + $0x1ac] sm:$0xf]
    %v2820 = vld [vmem:[#allocation11 + $0x1b0] sm:$0xf]
    %v2821 = vld [vmem:[#allocation11 + $0x1b4] sm:$0xf]
    %v2822 = vld [vmem:[#allocation11 + $0x1b8] sm:$0xf]
    %v2823 = vld [vmem:[#allocation11 + $0x1bc] sm:$0xf]
    %v2824 = vld [vmem:[#allocation11 + $0x1c0] sm:$0xf]
    %v2825 = vld [vmem:[#allocation11 + $0x1c4] sm:$0xf]
    %v2826 = vld [vmem:[#allocation11 + $0x1c8] sm:$0xf]
    %v2827 = vld [vmem:[#allocation11 + $0x1cc] sm:$0xf]
    %v2828 = vld [vmem:[#allocation11 + $0x1d0] sm:$0xf]
    %v2829 = vld [vmem:[#allocation11 + $0x1d4] sm:$0xf]
    %v2830 = vld [vmem:[#allocation11 + $0x1d8] sm:$0xf]
    %v2831 = vld [vmem:[#allocation11 + $0x1dc] sm:$0xf]
    %v2832 = vld [vmem:[#allocation11 + $0x1e0] sm:$0xf]
    %v2833 = vld [vmem:[#allocation11 + $0x1e4] sm:$0xf]
    %v2834 = vld [vmem:[#allocation11 + $0x1e8] sm:$0xf]
    %v2835 = vld [vmem:[#allocation11 + $0x1ec] sm:$0xf]
    %v2836 = vld [vmem:[#allocation11 + $0x1f0] sm:$0xf]
    %v2837 = vld [vmem:[#allocation11 + $0x1f4] sm:$0xf]
    %v2838 = vld [vmem:[#allocation11 + $0x1f8] sm:$0xf]
    %v2839 = vld [vmem:[#allocation11 + $0x1fc] sm:$0xf]
    %v2840 = vld [vmem:[%s8] sm:$0x1]
    %v2842 = vlaneseq
    %v2843 = vshrl.u32 %v2842, 7
    %v2844 = vsub.s32 0, %v2843
    %v2845 = vrot.slane %v2840, %v2844
    %v2975 = vunpack.c.l.b16 %v2712
    %v2976 = vunpack.c.l.b16 %v2713
    %v2977 = vunpack.c.l.b16 %v2714
    %v2978 = vunpack.c.l.b16 %v2715
    %v2979 = vunpack.c.l.b16 %v2716
    %v2980 = vunpack.c.l.b16 %v2717
    %v2981 = vunpack.c.l.b16 %v2718
    %v2982 = vunpack.c.l.b16 %v2719
    %v2983 = vunpack.c.l.b16 %v2720
    %v2984 = vunpack.c.l.b16 %v2721
    %v2985 = vunpack.c.l.b16 %v2722
    %v2986 = vunpack.c.l.b16 %v2723
    %v2987 = vunpack.c.l.b16 %v2724
    %v2988 = vunpack.c.l.b16 %v2725
    %v2989 = vunpack.c.l.b16 %v2726
    %v2990 = vunpack.c.l.b16 %v2727
    %v2991 = vunpack.c.l.b16 %v2728
    %v2992 = vunpack.c.l.b16 %v2729
    %v2993 = vunpack.c.l.b16 %v2730
    %v2994 = vunpack.c.l.b16 %v2731
    %v2995 = vunpack.c.l.b16 %v2732
    %v2996 = vunpack.c.l.b16 %v2733
    %v2997 = vunpack.c.l.b16 %v2734
    %v2998 = vunpack.c.l.b16 %v2735
    %v2999 = vunpack.c.l.b16 %v2736
    %v3000 = vunpack.c.l.b16 %v2737
    %v3001 = vunpack.c.l.b16 %v2738
    %v3002 = vunpack.c.l.b16 %v2739
    %v3003 = vunpack.c.l.b16 %v2740
    %v3004 = vunpack.c.l.b16 %v2741
    %v3005 = vunpack.c.l.b16 %v2742
    %v3006 = vunpack.c.l.b16 %v2743
    %v3007 = vunpack.c.l.b16 %v2744
    %v3008 = vunpack.c.l.b16 %v2745
    %v3009 = vunpack.c.l.b16 %v2746
    %v3010 = vunpack.c.l.b16 %v2747
    %v3011 = vunpack.c.l.b16 %v2748
    %v3012 = vunpack.c.l.b16 %v2749
    %v3013 = vunpack.c.l.b16 %v2750
    %v3014 = vunpack.c.l.b16 %v2751
    %v3015 = vunpack.c.l.b16 %v2752
    %v3016 = vunpack.c.l.b16 %v2753
    %v3017 = vunpack.c.l.b16 %v2754
    %v3018 = vunpack.c.l.b16 %v2755
    %v3019 = vunpack.c.l.b16 %v2756
    %v3020 = vunpack.c.l.b16 %v2757
    %v3021 = vunpack.c.l.b16 %v2758
    %v3022 = vunpack.c.l.b16 %v2759
    %v3023 = vunpack.c.l.b16 %v2760
    %v3024 = vunpack.c.l.b16 %v2761
    %v3025 = vunpack.c.l.b16 %v2762
    %v3026 = vunpack.c.l.b16 %v2763
    %v3027 = vunpack.c.l.b16 %v2764
    %v3028 = vunpack.c.l.b16 %v2765
    %v3029 = vunpack.c.l.b16 %v2766
    %v3030 = vunpack.c.l.b16 %v2767
    %v3031 = vunpack.c.l.b16 %v2768
    %v3032 = vunpack.c.l.b16 %v2769
    %v3033 = vunpack.c.l.b16 %v2770
    %v3034 = vunpack.c.l.b16 %v2771
    %v3035 = vunpack.c.l.b16 %v2772
    %v3036 = vunpack.c.l.b16 %v2773
    %v3037 = vunpack.c.l.b16 %v2774
    %v3038 = vunpack.c.l.b16 %v2775
    %v3039 = vunpack.c.l.b16 %v2776
    %v3040 = vunpack.c.l.b16 %v2777
    %v3041 = vunpack.c.l.b16 %v2778
    %v3042 = vunpack.c.l.b16 %v2779
    %v3043 = vunpack.c.l.b16 %v2780
    %v3044 = vunpack.c.l.b16 %v2781
    %v3045 = vunpack.c.l.b16 %v2782
    %v3046 = vunpack.c.l.b16 %v2783
    %v3047 = vunpack.c.l.b16 %v2784
    %v3048 = vunpack.c.l.b16 %v2785
    %v3049 = vunpack.c.l.b16 %v2786
    %v3050 = vunpack.c.l.b16 %v2787
    %v3051 = vunpack.c.l.b16 %v2788
    %v3052 = vunpack.c.l.b16 %v2789
    %v3053 = vunpack.c.l.b16 %v2790
    %v3054 = vunpack.c.l.b16 %v2791
    %v3055 = vunpack.c.l.b16 %v2792
    %v3056 = vunpack.c.l.b16 %v2793
    %v3057 = vunpack.c.l.b16 %v2794
    %v3058 = vunpack.c.l.b16 %v2795
    %v3059 = vunpack.c.l.b16 %v2796
    %v3060 = vunpack.c.l.b16 %v2797
    %v3061 = vunpack.c.l.b16 %v2798
    %v3062 = vunpack.c.l.b16 %v2799
    %v3063 = vunpack.c.l.b16 %v2800
    %v3064 = vunpack.c.l.b16 %v2801
    %v3065 = vunpack.c.l.b16 %v2802
    %v3066 = vunpack.c.l.b16 %v2803
    %v3067 = vunpack.c.l.b16 %v2804
    %v3068 = vunpack.c.l.b16 %v2805
    %v3069 = vunpack.c.l.b16 %v2806
    %v3070 = vunpack.c.l.b16 %v2807
    %v3071 = vunpack.c.l.b16 %v2808
    %v3072 = vunpack.c.l.b16 %v2809
    %v3073 = vunpack.c.l.b16 %v2810
    %v3074 = vunpack.c.l.b16 %v2811
    %v3075 = vunpack.c.l.b16 %v2812
    %v3076 = vunpack.c.l.b16 %v2813
    %v3077 = vunpack.c.l.b16 %v2814
    %v3078 = vunpack.c.l.b16 %v2815
    %v3079 = vunpack.c.l.b16 %v2816
    %v3080 = vunpack.c.l.b16 %v2817
    %v3081 = vunpack.c.l.b16 %v2818
    %v3082 = vunpack.c.l.b16 %v2819
    %v3083 = vunpack.c.l.b16 %v2820
    %v3084 = vunpack.c.l.b16 %v2821
    %v3085 = vunpack.c.l.b16 %v2822
    %v3086 = vunpack.c.l.b16 %v2823
    %v3087 = vunpack.c.l.b16 %v2824
    %v3088 = vunpack.c.l.b16 %v2825
    %v3089 = vunpack.c.l.b16 %v2826
    %v3090 = vunpack.c.l.b16 %v2827
    %v3091 = vunpack.c.l.b16 %v2828
    %v3092 = vunpack.c.l.b16 %v2829
    %v3093 = vunpack.c.l.b16 %v2830
    %v3094 = vunpack.c.l.b16 %v2831
    %v3095 = vunpack.c.l.b16 %v2832
    %v3096 = vunpack.c.l.b16 %v2833
    %v3097 = vunpack.c.l.b16 %v2834
    %v3098 = vunpack.c.l.b16 %v2835
    %v3099 = vunpack.c.l.b16 %v2836
    %v3100 = vunpack.c.l.b16 %v2837
    %v3101 = vunpack.c.l.b16 %v2838
    %v3102 = vunpack.c.l.b16 %v2839
    %v3103 = vpack.c.b16 %v2976, %v2975
    %v3104 = vpack.c.b16 %v2978, %v2977
    %v3105 = vpack.c.b16 %v2980, %v2979
    %v3106 = vpack.c.b16 %v2982, %v2981
    %v3107 = vpack.c.b16 %v2984, %v2983
    %v3108 = vpack.c.b16 %v2986, %v2985
    %v3109 = vpack.c.b16 %v2988, %v2987
    %v3110 = vpack.c.b16 %v2990, %v2989
    %v3111 = vpack.c.b16 %v2992, %v2991
    %v3112 = vpack.c.b16 %v2994, %v2993
    %v3113 = vpack.c.b16 %v2996, %v2995
    %v3114 = vpack.c.b16 %v2998, %v2997
    %v3115 = vpack.c.b16 %v3000, %v2999
    %v3116 = vpack.c.b16 %v3002, %v3001
    %v3117 = vpack.c.b16 %v3004, %v3003
    %v3118 = vpack.c.b16 %v3006, %v3005
    %v3119 = vpack.c.b16 %v3008, %v3007
    %v3120 = vpack.c.b16 %v3010, %v3009
    %v3121 = vpack.c.b16 %v3012, %v3011
    %v3122 = vpack.c.b16 %v3014, %v3013
    %v3123 = vpack.c.b16 %v3016, %v3015
    %v3124 = vpack.c.b16 %v3018, %v3017
    %v3125 = vpack.c.b16 %v3020, %v3019
    %v3126 = vpack.c.b16 %v3022, %v3021
    %v3127 = vpack.c.b16 %v3024, %v3023
    %v3128 = vpack.c.b16 %v3026, %v3025
    %v3129 = vpack.c.b16 %v3028, %v3027
    %v3130 = vpack.c.b16 %v3030, %v3029
    %v3131 = vpack.c.b16 %v3032, %v3031
    %v3132 = vpack.c.b16 %v3034, %v3033
    %v3133 = vpack.c.b16 %v3036, %v3035
    %v3134 = vpack.c.b16 %v3038, %v3037
    %v3135 = vpack.c.b16 %v3040, %v3039
    %v3136 = vpack.c.b16 %v3042, %v3041
    %v3137 = vpack.c.b16 %v3044, %v3043
    %v3138 = vpack.c.b16 %v3046, %v3045
    %v3139 = vpack.c.b16 %v3048, %v3047
    %v3140 = vpack.c.b16 %v3050, %v3049
    %v3141 = vpack.c.b16 %v3052, %v3051
    %v3142 = vpack.c.b16 %v3054, %v3053
    %v3143 = vpack.c.b16 %v3056, %v3055
    %v3144 = vpack.c.b16 %v3058, %v3057
    %v3145 = vpack.c.b16 %v3060, %v3059
    %v3146 = vpack.c.b16 %v3062, %v3061
    %v3147 = vpack.c.b16 %v3064, %v3063
    %v3148 = vpack.c.b16 %v3066, %v3065
    %v3149 = vpack.c.b16 %v3068, %v3067
    %v3150 = vpack.c.b16 %v3070, %v3069
    %v3151 = vpack.c.b16 %v3072, %v3071
    %v3152 = vpack.c.b16 %v3074, %v3073
    %v3153 = vpack.c.b16 %v3076, %v3075
    %v3154 = vpack.c.b16 %v3078, %v3077
    %v3155 = vpack.c.b16 %v3080, %v3079
    %v3156 = vpack.c.b16 %v3082, %v3081
    %v3157 = vpack.c.b16 %v3084, %v3083
    %v3158 = vpack.c.b16 %v3086, %v3085
    %v3159 = vpack.c.b16 %v3088, %v3087
    %v3160 = vpack.c.b16 %v3090, %v3089
    %v3161 = vpack.c.b16 %v3092, %v3091
    %v3162 = vpack.c.b16 %v3094, %v3093
    %v3163 = vpack.c.b16 %v3096, %v3095
    %v3164 = vpack.c.b16 %v3098, %v3097
    %v3165 = vpack.c.b16 %v3100, %v3099
    %v3166 = vpack.c.b16 %v3102, %v3101
    %3231 = vmatprep.subr.bf16.mxu0 0
    %3232 = vmatpush1.bf16.msra.mxu0 %v3110
    %3233 = vmatprep.subr.bf16.mxu0 0
    %3234 = vmatpush1.bf16.msra.mxu0 %v3109
    %3235 = vmatprep.subr.bf16.mxu0 0
    %3236 = vmatpush1.bf16.msra.mxu0 %v3108
    %3237 = vmatprep.subr.bf16.mxu0 0
    %3238 = vmatpush1.bf16.msra.mxu0 %v3107
    %3239 = vmatprep.subr.bf16.mxu0 0
    %3240 = vmatpush1.bf16.msra.mxu0 %v3106
    %3241 = vmatprep.subr.bf16.mxu0 0
    %3242 = vmatpush1.bf16.msra.mxu0 %v3105
    %3243 = vmatprep.subr.bf16.mxu0 0
    %3244 = vmatpush1.bf16.msra.mxu0 %v3104
    %3245 = vmatprep.subr.bf16.mxu0 0
    %3246 = vmatpush1.bf16.msra.mxu0 %v3103
    %3247 = vmatprep.subr.bf16.mxu0 0
    %3248 = vmatpush2.bf16.msra.mxu0 %v3118
    %3249 = vmatprep.subr.bf16.mxu0 0
    %3250 = vmatpush2.bf16.msra.mxu0 %v3117
    %3251 = vmatprep.subr.bf16.mxu0 0
    %3252 = vmatpush2.bf16.msra.mxu0 %v3116
    %3253 = vmatprep.subr.bf16.mxu0 0
    %3254 = vmatpush2.bf16.msra.mxu0 %v3115
    %3255 = vmatprep.subr.bf16.mxu0 0
    %3256 = vmatpush2.bf16.msra.mxu0 %v3114
    %3257 = vmatprep.subr.bf16.mxu0 0
    %3258 = vmatpush2.bf16.msra.mxu0 %v3113
    %3259 = vmatprep.subr.bf16.mxu0 0
    %3260 = vmatpush2.bf16.msra.mxu0 %v3112
    %3261 = vmatprep.subr.bf16.mxu0 0
    %3262 = vmatpush2.bf16.msra.mxu0 %v3111
    %3263 = vmatprep.mubr.bf16.mxu0 %v2705
    %3264 = vmatmul.mubr.bf16.gmra.mxu0 %v2704
    %v3265 = vpop.f32.mrf.mxu0
    %v3266 = vadd.f32 %v2845, %v3265
    %v3267 = vpop.f32.mrf.mxu0
    %v3268 = vpop.f32.mrf.mxu0
    %v3269 = vadd.f32 %v2845, %v3268
    %v3270 = vpop.f32.mrf.mxu0
    %3271 = vdwg.mxu0
    %3272 = vmatprep.subr.bf16.mxu0 0
    %3273 = vmatpush1.bf16.msra.mxu0 %v3126
    %3274 = vmatprep.subr.bf16.mxu0 0
    %3275 = vmatpush1.bf16.msra.mxu0 %v3125
    %3276 = vmatprep.subr.bf16.mxu0 0
    %3277 = vmatpush1.bf16.msra.mxu0 %v3124
    %3278 = vmatprep.subr.bf16.mxu0 0
    %3279 = vmatpush1.bf16.msra.mxu0 %v3123
    %3280 = vmatprep.subr.bf16.mxu0 0
    %3281 = vmatpush1.bf16.msra.mxu0 %v3122
    %3282 = vmatprep.subr.bf16.mxu0 0
    %3283 = vmatpush1.bf16.msra.mxu0 %v3121
    %3284 = vmatprep.subr.bf16.mxu0 0
    %3285 = vmatpush1.bf16.msra.mxu0 %v3120
    %3286 = vmatprep.subr.bf16.mxu0 0
    %3287 = vmatpush1.bf16.msra.mxu0 %v3119
    %3288 = vmatprep.subr.bf16.mxu0 0
    %3289 = vmatpush2.bf16.msra.mxu0 %v3134
    %3290 = vmatprep.subr.bf16.mxu0 0
    %3291 = vmatpush2.bf16.msra.mxu0 %v3133
    %3292 = vmatprep.subr.bf16.mxu0 0
    %3293 = vmatpush2.bf16.msra.mxu0 %v3132
    %3294 = vmatprep.subr.bf16.mxu0 0
    %3295 = vmatpush2.bf16.msra.mxu0 %v3131
    %3296 = vmatprep.subr.bf16.mxu0 0
    %3297 = vmatpush2.bf16.msra.mxu0 %v3130
    %3298 = vmatprep.subr.bf16.mxu0 0
    %3299 = vmatpush2.bf16.msra.mxu0 %v3129
    %3300 = vmatprep.subr.bf16.mxu0 0
    %3301 = vmatpush2.bf16.msra.mxu0 %v3128
    %3302 = vmatprep.subr.bf16.mxu0 0
    %3303 = vmatpush2.bf16.msra.mxu0 %v3127
    %3304 = vmatprep.mubr.bf16.mxu0 %v2707
    %3305 = vmatmul.mubr.bf16.gmra.mxu0 %v2706
    %v3306 = vpop.f32.mrf.mxu0
    %v3307 = vadd.f32 %v3266, %v3306
    %v3308 = vpop.f32.mrf.mxu0
    %v3309 = vpop.f32.mrf.mxu0
    %v3310 = vadd.f32 %v3269, %v3309
    %v3311 = vpop.f32.mrf.mxu0
    %3312 = vdwg.mxu0
    %3313 = vmatprep.subr.bf16.mxu0 0
    %3314 = vmatpush1.bf16.msra.mxu0 %v3142
    %3315 = vmatprep.subr.bf16.mxu0 0
    %3316 = vmatpush1.bf16.msra.mxu0 %v3141
    %3317 = vmatprep.subr.bf16.mxu0 0
    %3318 = vmatpush1.bf16.msra.mxu0 %v3140
    %3319 = vmatprep.subr.bf16.mxu0 0
    %3320 = vmatpush1.bf16.msra.mxu0 %v3139
    %3321 = vmatprep.subr.bf16.mxu0 0
    %3322 = vmatpush1.bf16.msra.mxu0 %v3138
    %3323 = vmatprep.subr.bf16.mxu0 0
    %3324 = vmatpush1.bf16.msra.mxu0 %v3137
    %3325 = vmatprep.subr.bf16.mxu0 0
    %3326 = vmatpush1.bf16.msra.mxu0 %v3136
    %3327 = vmatprep.subr.bf16.mxu0 0
    %3328 = vmatpush1.bf16.msra.mxu0 %v3135
    %3329 = vmatprep.subr.bf16.mxu0 0
    %3330 = vmatpush2.bf16.msra.mxu0 %v3150
    %3331 = vmatprep.subr.bf16.mxu0 0
    %3332 = vmatpush2.bf16.msra.mxu0 %v3149
    %3333 = vmatprep.subr.bf16.mxu0 0
    %3334 = vmatpush2.bf16.msra.mxu0 %v3148
    %3335 = vmatprep.subr.bf16.mxu0 0
    %3336 = vmatpush2.bf16.msra.mxu0 %v3147
    %3337 = vmatprep.subr.bf16.mxu0 0
    %3338 = vmatpush2.bf16.msra.mxu0 %v3146
    %3339 = vmatprep.subr.bf16.mxu0 0
    %3340 = vmatpush2.bf16.msra.mxu0 %v3145
    %3341 = vmatprep.subr.bf16.mxu0 0
    %3342 = vmatpush2.bf16.msra.mxu0 %v3144
    %3343 = vmatprep.subr.bf16.mxu0 0
    %3344 = vmatpush2.bf16.msra.mxu0 %v3143
    %3345 = vmatprep.mubr.bf16.mxu0 %v2709
    %3346 = vmatmul.mubr.bf16.gmra.mxu0 %v2708
    %v3347 = vpop.f32.mrf.mxu0
    %v3348 = vadd.f32 %v3307, %v3347
    %v3349 = vpop.f32.mrf.mxu0
    %v3350 = vpop.f32.mrf.mxu0
    %v3351 = vadd.f32 %v3310, %v3350
    %v3352 = vpop.f32.mrf.mxu0
    %3353 = vdwg.mxu0
    %3354 = vmatprep.subr.bf16.mxu0 0
    %3355 = vmatpush1.bf16.msra.mxu0 %v3158
    %3356 = vmatprep.subr.bf16.mxu0 0
    %3357 = vmatpush1.bf16.msra.mxu0 %v3157
    %3358 = vmatprep.subr.bf16.mxu0 0
    %3359 = vmatpush1.bf16.msra.mxu0 %v3156
    %3360 = vmatprep.subr.bf16.mxu0 0
    %3361 = vmatpush1.bf16.msra.mxu0 %v3155
    %3362 = vmatprep.subr.bf16.mxu0 0
    %3363 = vmatpush1.bf16.msra.mxu0 %v3154
    %3364 = vmatprep.subr.bf16.mxu0 0
    %3365 = vmatpush1.bf16.msra.mxu0 %v3153
    %3366 = vmatprep.subr.bf16.mxu0 0
    %3367 = vmatpush1.bf16.msra.mxu0 %v3152
    %3368 = vmatprep.subr.bf16.mxu0 0
    %3369 = vmatpush1.bf16.msra.mxu0 %v3151
    %3370 = vmatprep.subr.bf16.mxu0 0
    %3371 = vmatpush2.bf16.msra.mxu0 %v3166
    %3372 = vmatprep.subr.bf16.mxu0 0
    %3373 = vmatpush2.bf16.msra.mxu0 %v3165
    %3374 = vmatprep.subr.bf16.mxu0 0
    %3375 = vmatpush2.bf16.msra.mxu0 %v3164
    %3376 = vmatprep.subr.bf16.mxu0 0
    %3377 = vmatpush2.bf16.msra.mxu0 %v3163
    %3378 = vmatprep.subr.bf16.mxu0 0
    %3379 = vmatpush2.bf16.msra.mxu0 %v3162
    %3380 = vmatprep.subr.bf16.mxu0 0
    %3381 = vmatpush2.bf16.msra.mxu0 %v3161
    %3382 = vmatprep.subr.bf16.mxu0 0
    %3383 = vmatpush2.bf16.msra.mxu0 %v3160
    %3384 = vmatprep.subr.bf16.mxu0 0
    %3385 = vmatpush2.bf16.msra.mxu0 %v3159
    %3386 = vmatprep.mubr.bf16.mxu0 %v2711
    %3387 = vmatmul.mubr.bf16.gmra.mxu0 %v2710
    %v3388 = vpop.f32.mrf.mxu0
    %v3389 = vadd.f32 %v3348, %v3388
    %v3390 = vpop.f32.mrf.mxu0
    %v3391 = vpop.f32.mrf.mxu0
    %v3392 = vadd.f32 %v3351, %v3391
    %v3393 = vpop.f32.mrf.mxu0
    %3394 = vdwg.mxu0
    %v3395 = vmul.f32 %v3389, 0.5
    %v3396 = vmul.f32 %v3392, 0.5
    %v3397 = vtanh.pop %v3395
    %v3398 = vtanh.pop %v3396
    %v3399 = vmul.f32 %v3397, 0.5
    %v3400 = vmul.f32 %v3398, 0.5
    %v3401 = vadd.f32 %v3399, 0.5
    %v3402 = vadd.f32 %v3400, 0.5
    %3403 = vst [vmem:[#allocation13] sm:$0xff] %v3401
    %3404 = vst [vmem:[#allocation13 + $0x8] sm:$0xff] %v3402
    // Predicated region
    $region62: #{tpu_custom_call.1} parent=1 // pred_check
      _
    $region63: #{tpu_custom_call.1} parent=1 // pred_check_branch
      %3406 = sbr.rel (0) target = $region65
    $region64: #{tpu_custom_call.1} parent=1 // pred_region
      %s3408 = ssub.s32 256, 256
      %3409 = vsyncadd [#allocation4], %s3408
      %s3410 = sshll.u32 [#allocation13], 4
      %s3411 = int_to_ptr.vmem [resolvable:$true] %s3410
      %3416 = dma.vmem_to_hbm [thread:$0]  %s3411, 256, %s9, [#allocation4], 128, 128, 8
    $region65: #{tpu_custom_call.1} parent=1 // pred_fallthru
      _
    // Predicated region
    $region66: #{tpu_custom_call.1} parent=1 // pred_check
      _
    $region67: #{tpu_custom_call.1} parent=1 // pred_check_branch
      %3418 = sbr.rel (0) target = $region69
    $region68: #{tpu_custom_call.1} parent=1 // pred_region
      %3419 = dma.done [#allocation4], 256
    $region69: #{tpu_custom_call.1} parent=1 // pred_fallthru
      _
    %3420 = vsyncpa [#allocation3], 1
    %3421 = vsyncpa [#allocation6], 1
    %3422 = vsyncpa [#allocation9], 1
    %3423 = vsyncpa [#allocation12], 1
    %3424 = vsyncpa [#allocation4], 1

</llo_original>
